<compile_context>
chip_gen: v5e
topology: v5e:2x2
jax: 0.10.0
libtpu: 0.0.40
codegen_flags: <defaults>
</compile_context>

<pallas_src>
import functools

import jax
import jax.numpy as jnp
from jax.experimental import pallas as pl
from jax.experimental.pallas import tpu as pltpu

WINDOW = 9
PAD = WINDOW // 2  # 4


def _round_up(x, m):
    return (x + m - 1) // m * m


def _vmem_capacity_bytes():
    try:
        return int(pltpu.get_tpu_info().vmem_capacity_bytes)
    except Exception:
        return 64 * 1024 * 1024  # conservative fallback (v7x-sized)


def _roll_by(x, d, axis):
    """out[..., i, ...] = x[..., (i + d) mod n, ...] along `axis` (cyclic)."""
    n = x.shape[axis]
    return pltpu.roll(x, (-d) % n, axis=axis)


def _box_pass(x, axis):
    """9-tap ones filter along `axis` (cyclic), via a 3+3 shift decomposition."""
    a = x + _roll_by(x, 1, axis) + _roll_by(x, -1, axis)      # offsets {-1, 0, 1}
    return a + _roll_by(a, 3, axis) + _roll_by(a, -3, axis)   # offsets {-4 .. 4}


def _ncc_kernel(mask_ref, *refs, BN, Hp, LANES, i_batched, j_batched, use_mxu):
    if use_mxu:
        band_ref, i_ref, j_ref, out_ref = refs
    else:
        band_ref = None
        i_ref, j_ref, out_ref = refs

    R = BN * Hp
    inv_wv = jnp.float32(1.0 / (WINDOW * WINDOW))

    if use_mxu:
        band = band_ref[...]

        def lane_pass(x):
            # Exact zero-padded 9-tap sum along lanes on the (otherwise idle) MXU.
            return jnp.dot(x, band, precision=jax.lax.Precision.HIGHEST,
                           preferred_element_type=jnp.float32)
    else:
        def lane_pass(x):
            return _box_pass(x, 1)

    def box(x):
        # Separable 9x9 box sum: cyclic sublane pass (XLU rolls) + lane pass.
        # The cyclic wrap only ever pulls in zeros for valid output rows because
        # every element block ends with >= 4 zero rows (Hp >= H + 4).
        return lane_pass(_box_pass(x, 0))

    def load2d(ref, batched):
        n = BN if batched else 1
        if n == 1:
            return ref[0]                         # (Hp, LANES)
        return ref[...].reshape(n * Hp, LANES)    # layout-free: Hp % 8 == 0

    def expand(x):  # replicate a broadcast-input map to all BN element blocks
        return jnp.concatenate([x] * BN, axis=0)

    Ip = load2d(i_ref, i_batched)
    Jp = load2d(j_ref, j_batched)
    i_full = Ip.shape[0] == R
    j_full = Jp.shape[0] == R

    # Self box sums at native size (single block for broadcast inputs).
    I_sum = box(Ip)
    J_sum = box(Jp)
    I_var = box(Ip * Ip) - I_sum * I_sum * inv_wv
    J_var = box(Jp * Jp) - J_sum * J_sum * inv_wv

    # Cross term needs both images at full chunk size.
    Ipf = Ip if i_full else expand(Ip)
    Jpf = Jp if j_full else expand(Jp)
    IJ_sum = box(Ipf * Jpf)

    if not i_full:
        I_sum, I_var = expand(I_sum), expand(I_var)
    if not j_full:
        J_sum, J_var = expand(J_sum), expand(J_var)

    # NOTE: cross must stay in the form IJ_sum - I_sum*J_sum/81 so that all-zero
    # (batch-pad) blocks contribute exactly cc == 0.
    cross = IJ_sum - I_sum * J_sum * inv_wv
    cc = cross * cross * pl.reciprocal(I_var * J_var + 1e-5, approx=True)

    # Fused mask-multiply + sublane-fold reduction with independent accumulators
    # (breaks the serial add chain; final lane/step reduce + mean happen in XLA).
    n_groups = R // 8
    NACC = min(4, n_groups)
    accs = [None] * NACC
    for g in range(n_groups):
        r0 = g * 8
        m0 = r0 % Hp
        term = cc[r0:r0 + 8, :] * mask_ref[m0:m0 + 8, :]
        k = g % NACC
        accs[k] = term if accs[k] is None else accs[k] + term
    part = accs[0]
    for a in accs[1:]:
        part = part + a
    out_ref[...] = part


def ncc_loss(I, J, windows_size=WINDOW):
    """I, J: (n, 1, h, w) arrays; batch dims broadcast like the torch module."""
    assert windows_size == WINDOW
    I = jnp.asarray(I, jnp.float32)
    J = jnp.asarray(J, jnp.float32)
    assert I.ndim == 4 and J.ndim == 4 and I.shape[1] == 1 and J.shape[1] == 1
    assert I.shape[2:] == J.shape[2:]
    N = max(I.shape[0], J.shape[0])
    assert I.shape[0] in (1, N) and J.shape[0] in (1, N)
    H, W = I.shape[2], I.shape[3]

    i_batched = I.shape[0] == N
    j_batched = J.shape[0] == N

    Hp = _round_up(H + PAD, 8)        # per-element sublane block (zeros beyond H)
    LANES = _round_up(W + PAD, 128)   # lane-dense padded width (zeros beyond W)
    use_mxu = LANES <= 1024           # for very wide images keep rolls (v5e roofline)

    # ---- generation-aware VMEM budget / batch-chunk sizing ----
    vmem_cap = _vmem_capacity_bytes()                       # 128 MiB v5e/v6e, 64 MiB v7x
    vmem_limit = int(min(vmem_cap * 3 // 4, 100 * 1024 * 1024))
    budget = vmem_limit - 6 * 1024 * 1024                   # headroom for Mosaic temps
    map_bytes = Hp * LANES * 4
    const_bytes = (Hp * LANES + (LANES * LANES if use_mxu else 0)) * 4

    def step_bytes(bn):
        live_maps = 12 * bn                                  # rough live f32 intermediates
        in_bufs = 2 * ((bn if i_batched else 1) + (bn if j_batched else 1))  # dbl-buffered
        return (live_maps + in_bufs) * map_bytes + const_bytes + 2 * 8 * LANES * 4

    bn_cap = min(N, 16)
    if N >= 2:
        bn_cap = min(bn_cap, -(-N // 2))   # keep >= 2 grid steps (v7x megacore)
    BN = 1
    for bn in range(2, bn_cap + 1):
        if step_bytes(bn) <= budget:
            BN = bn
        else:
            break
    # TODO(synk): if step_bytes(1) > budget (huge images on v7x), fall back to
    # H-strip halo tiling instead of relying on the compiler squeezing it in.

    G = -(-N // BN)
    N_pad = G * BN                        # zero-padded elements contribute cc == 0

    def prep(x, batched):
        x = x[:, 0]                       # (n, H, W)
        n_out = N_pad if batched else 1
        return jnp.pad(x, ((0, n_out - x.shape[0]), (0, Hp - H), (0, LANES - W)))

    Ia = prep(I, i_batched)
    Ja = prep(J, j_batched)

    # Validity mask (real conv-output rows/cols of each element block), f32 0/1.
    mask = jnp.zeros((Hp, LANES), jnp.float32).at[:H, :W].set(1.0)

    def img_spec(batched):
        if batched:
            return pl.BlockSpec((BN, Hp, LANES), lambda g: (g, 0, 0))
        # Broadcast input: never materialized over batch; always read block 0.
        return pl.BlockSpec((1, Hp, LANES), lambda g: (0, 0, 0))

    inputs = [mask]
    in_specs = [pl.BlockSpec((Hp, LANES), lambda g: (0, 0))]
    if use_mxu:
        idx = jnp.arange(LANES)
        band = (jnp.abs(idx[:, None] - idx[None, :]) <= PAD).astype(jnp.float32)
        inputs.append(band)
        in_specs.append(pl.BlockSpec((LANES, LANES), lambda g: (0, 0)))
    inputs += [Ia, Ja]
    in_specs += [img_spec(i_batched), img_spec(j_batched)]

    kernel = functools.partial(
        _ncc_kernel, BN=BN, Hp=Hp, LANES=LANES,
        i_batched=i_batched, j_batched=j_batched, use_mxu=use_mxu)

    partials = pl.pallas_call(
        kernel,
        out_shape=jax.ShapeDtypeStruct((G * 8, LANES), jnp.float32),
        grid_spec=pltpu.PrefetchScalarGridSpec(
            num_scalar_prefetch=0,
            grid=(G,),
            in_specs=in_specs,
            out_specs=pl.BlockSpec((8, LANES), lambda g: (g, 0)),
        ),
        compiler_params=pltpu.CompilerParams(
            dimension_semantics=("parallel",),
            vmem_limit_bytes=vmem_limit,
        ),
    )(*inputs)

    return -jnp.sum(partials) / jnp.float32(N * H * W)


def _ncc_ref(I, J):
    """Pure-JAX reference (same math as the torch module) for a sanity check."""
    I = jnp.asarray(I, jnp.float32)
    J = jnp.asarray(J, jnp.float32)
    win_vol = float(WINDOW ** 2)

    def box(x):  # x: (n, 1, h, w)
        return jax.lax.reduce_window(
            x, 0.0, jax.lax.add,
            window_dimensions=(1, 1, WINDOW, WINDOW),
            window_strides=(1, 1, 1, 1),
            padding=((0, 0), (0, 0), (PAD, PAD), (PAD, PAD)))

    I_sum, J_sum = box(I), box(J)
    I2_sum, J2_sum, IJ_sum = box(I * I), box(J * J), box(I * J)
    E_I, E_J = I_sum / win_vol, J_sum / win_vol
    cross = IJ_sum - I_sum * E_J - J_sum * E_I + E_I * E_J * win_vol
    I_var = I2_sum - 2 * E_I * I_sum + E_I * E_I * win_vol
    J_var = J2_sum - 2 * E_J * J_sum + E_J * E_J * win_vol
    cc = cross * cross / (I_var * J_var + 1e-05)
    return -jnp.mean(cc)


if __name__ == "__main__":
    key = jax.random.PRNGKey(0)
    k1, k2 = jax.random.split(key)
    # (n, 1, h, w), matching the module's expected 2D input layout.
    I = jax.random.uniform(k1, (2, 1, 16, 16), dtype=jnp.float32)
    J = jax.random.uniform(k2, (2, 1, 16, 16), dtype=jnp.float32)

    out = ncc_loss(I, J)
    out = jax.block_until_ready(out)
    ref = _ncc_ref(I, J)
    assert jnp.allclose(out, ref, atol=1e-3, rtol=1e-3), (out, ref)

    # Batch-broadcast path (J has batch 1): no broadcast materialization.
    Jb = jax.random.uniform(k2, (1, 1, 16, 16), dtype=jnp.float32)
    out_b = ncc_loss(I, Jb)
    out_b = jax.block_until_ready(out_b)
    ref_b = _ncc_ref(I, Jb)
    assert jnp.allclose(out_b, ref_b, atol=1e-3, rtol=1e-3), (out_b, ref_b)

    print("KERNEL_OK")
</pallas_src>

<mosaic_0001>
module attributes {stable_mosaic.version = 11 : i64} {
  func.func @_ncc_kernel(%arg0: i32, %arg1: memref<24x128xf32, #tpu.memory_space<vmem>>, %arg2: memref<128x128xf32, #tpu.memory_space<vmem>>, %arg3: memref<1x24x128xf32, #tpu.memory_space<vmem>>, %arg4: memref<1x24x128xf32, #tpu.memory_space<vmem>>, %arg5: memref<8x128xf32, #tpu.memory_space<vmem>>) attributes {dimension_semantics = [#tpu.dimension_semantics<parallel>], iteration_bounds = array<i64: 2>, scalar_prefetch = 0 : i64, scratch_operands = 0 : i64, tpu.core_type = #tpu.core_type<tc>, window_params = [{pipeline_mode = #tpu.pipeline_mode<synchronous>, transform_indices = @transform_0, window_bounds = array<i64: 24, 128>}, {pipeline_mode = #tpu.pipeline_mode<synchronous>, transform_indices = @transform_1, window_bounds = array<i64: 128, 128>}, {transform_indices = @transform_2, window_bounds = array<i64: 1, 24, 128>}, {transform_indices = @transform_3, window_bounds = array<i64: 1, 24, 128>}, {transform_indices = @transform_4, window_bounds = array<i64: 8, 128>}]} {
    %c0 = arith.constant 0 : index
    %c0_0 = arith.constant 0 : index
    %0 = vector.load %arg2[%c0, %c0_0] : memref<128x128xf32, #tpu.memory_space<vmem>>, vector<128x128xf32>
    %c0_1 = arith.constant 0 : index
    %c0_2 = arith.constant 0 : index
    %c0_3 = arith.constant 0 : index
    %1 = vector.load %arg3[%c0_1, %c0_2, %c0_3] : memref<1x24x128xf32, #tpu.memory_space<vmem>>, vector<1x24x128xf32>
    %2 = vector.shape_cast %1 : vector<1x24x128xf32> to vector<24x128xf32>
    %c0_4 = arith.constant 0 : index
    %c0_5 = arith.constant 0 : index
    %c0_6 = arith.constant 0 : index
    %3 = vector.load %arg4[%c0_4, %c0_5, %c0_6] : memref<1x24x128xf32, #tpu.memory_space<vmem>>, vector<1x24x128xf32>
    %4 = vector.shape_cast %3 : vector<1x24x128xf32> to vector<24x128xf32>
    %c23_i32 = arith.constant 23 : i32
    %5 = tpu.dynamic_rotate %2 by %c23_i32 dim 0 : vector<24x128xf32>, i32 -> vector<24x128xf32>
    %6 = arith.addf %2, %5 : vector<24x128xf32>
    %c1_i32 = arith.constant 1 : i32
    %7 = tpu.dynamic_rotate %2 by %c1_i32 dim 0 : vector<24x128xf32>, i32 -> vector<24x128xf32>
    %8 = arith.addf %6, %7 : vector<24x128xf32>
    %c21_i32 = arith.constant 21 : i32
    %9 = tpu.dynamic_rotate %8 by %c21_i32 dim 0 : vector<24x128xf32>, i32 -> vector<24x128xf32>
    %10 = arith.addf %8, %9 : vector<24x128xf32>
    %c3_i32 = arith.constant 3 : i32
    %11 = tpu.dynamic_rotate %8 by %c3_i32 dim 0 : vector<24x128xf32>, i32 -> vector<24x128xf32>
    %12 = arith.addf %10, %11 : vector<24x128xf32>
    %cst = arith.constant dense<0.000000e+00> : vector<24x128xf32>
    %13 = tpu.matmul %12, %0, %cst {dimension_numbers = #tpu.dot_dimension_numbers<[1], [0], [0], [1], [0, 0, 1, 1], [], []>, precision = #tpu.contract_precision<fp32>} : vector<24x128xf32>, vector<128x128xf32>, vector<24x128xf32> -> vector<24x128xf32>
    %c23_i32_7 = arith.constant 23 : i32
    %14 = tpu.dynamic_rotate %4 by %c23_i32_7 dim 0 : vector<24x128xf32>, i32 -> vector<24x128xf32>
    %15 = arith.addf %4, %14 : vector<24x128xf32>
    %c1_i32_8 = arith.constant 1 : i32
    %16 = tpu.dynamic_rotate %4 by %c1_i32_8 dim 0 : vector<24x128xf32>, i32 -> vector<24x128xf32>
    %17 = arith.addf %15, %16 : vector<24x128xf32>
    %c21_i32_9 = arith.constant 21 : i32
    %18 = tpu.dynamic_rotate %17 by %c21_i32_9 dim 0 : vector<24x128xf32>, i32 -> vector<24x128xf32>
    %19 = arith.addf %17, %18 : vector<24x128xf32>
    %c3_i32_10 = arith.constant 3 : i32
    %20 = tpu.dynamic_rotate %17 by %c3_i32_10 dim 0 : vector<24x128xf32>, i32 -> vector<24x128xf32>
    %21 = arith.addf %19, %20 : vector<24x128xf32>
    %cst_11 = arith.constant dense<0.000000e+00> : vector<24x128xf32>
    %22 = tpu.matmul %21, %0, %cst_11 {dimension_numbers = #tpu.dot_dimension_numbers<[1], [0], [0], [1], [0, 0, 1, 1], [], []>, precision = #tpu.contract_precision<fp32>} : vector<24x128xf32>, vector<128x128xf32>, vector<24x128xf32> -> vector<24x128xf32>
    %23 = arith.mulf %2, %2 : vector<24x128xf32>
    %c23_i32_12 = arith.constant 23 : i32
    %24 = tpu.dynamic_rotate %23 by %c23_i32_12 dim 0 : vector<24x128xf32>, i32 -> vector<24x128xf32>
    %25 = arith.addf %23, %24 : vector<24x128xf32>
    %c1_i32_13 = arith.constant 1 : i32
    %26 = tpu.dynamic_rotate %23 by %c1_i32_13 dim 0 : vector<24x128xf32>, i32 -> vector<24x128xf32>
    %27 = arith.addf %25, %26 : vector<24x128xf32>
    %c21_i32_14 = arith.constant 21 : i32
    %28 = tpu.dynamic_rotate %27 by %c21_i32_14 dim 0 : vector<24x128xf32>, i32 -> vector<24x128xf32>
    %29 = arith.addf %27, %28 : vector<24x128xf32>
    %c3_i32_15 = arith.constant 3 : i32
    %30 = tpu.dynamic_rotate %27 by %c3_i32_15 dim 0 : vector<24x128xf32>, i32 -> vector<24x128xf32>
    %31 = arith.addf %29, %30 : vector<24x128xf32>
    %cst_16 = arith.constant dense<0.000000e+00> : vector<24x128xf32>
    %32 = tpu.matmul %31, %0, %cst_16 {dimension_numbers = #tpu.dot_dimension_numbers<[1], [0], [0], [1], [0, 0, 1, 1], [], []>, precision = #tpu.contract_precision<fp32>} : vector<24x128xf32>, vector<128x128xf32>, vector<24x128xf32> -> vector<24x128xf32>
    %33 = arith.mulf %13, %13 : vector<24x128xf32>
    %cst_17 = arith.constant 0.0123456791 : f32
    %34 = vector.broadcast %cst_17 : f32 to vector<24x128xf32>
    %35 = arith.mulf %33, %34 : vector<24x128xf32>
    %36 = arith.subf %32, %35 : vector<24x128xf32>
    %37 = arith.mulf %4, %4 : vector<24x128xf32>
    %c23_i32_18 = arith.constant 23 : i32
    %38 = tpu.dynamic_rotate %37 by %c23_i32_18 dim 0 : vector<24x128xf32>, i32 -> vector<24x128xf32>
    %39 = arith.addf %37, %38 : vector<24x128xf32>
    %c1_i32_19 = arith.constant 1 : i32
    %40 = tpu.dynamic_rotate %37 by %c1_i32_19 dim 0 : vector<24x128xf32>, i32 -> vector<24x128xf32>
    %41 = arith.addf %39, %40 : vector<24x128xf32>
    %c21_i32_20 = arith.constant 21 : i32
    %42 = tpu.dynamic_rotate %41 by %c21_i32_20 dim 0 : vector<24x128xf32>, i32 -> vector<24x128xf32>
    %43 = arith.addf %41, %42 : vector<24x128xf32>
    %c3_i32_21 = arith.constant 3 : i32
    %44 = tpu.dynamic_rotate %41 by %c3_i32_21 dim 0 : vector<24x128xf32>, i32 -> vector<24x128xf32>
    %45 = arith.addf %43, %44 : vector<24x128xf32>
    %cst_22 = arith.constant dense<0.000000e+00> : vector<24x128xf32>
    %46 = tpu.matmul %45, %0, %cst_22 {dimension_numbers = #tpu.dot_dimension_numbers<[1], [0], [0], [1], [0, 0, 1, 1], [], []>, precision = #tpu.contract_precision<fp32>} : vector<24x128xf32>, vector<128x128xf32>, vector<24x128xf32> -> vector<24x128xf32>
    %47 = arith.mulf %22, %22 : vector<24x128xf32>
    %cst_23 = arith.constant 0.0123456791 : f32
    %48 = vector.broadcast %cst_23 : f32 to vector<24x128xf32>
    %49 = arith.mulf %47, %48 : vector<24x128xf32>
    %50 = arith.subf %46, %49 : vector<24x128xf32>
    %51 = arith.mulf %2, %4 : vector<24x128xf32>
    %c23_i32_24 = arith.constant 23 : i32
    %52 = tpu.dynamic_rotate %51 by %c23_i32_24 dim 0 : vector<24x128xf32>, i32 -> vector<24x128xf32>
    %53 = arith.addf %51, %52 : vector<24x128xf32>
    %c1_i32_25 = arith.constant 1 : i32
    %54 = tpu.dynamic_rotate %51 by %c1_i32_25 dim 0 : vector<24x128xf32>, i32 -> vector<24x128xf32>
    %55 = arith.addf %53, %54 : vector<24x128xf32>
    %c21_i32_26 = arith.constant 21 : i32
    %56 = tpu.dynamic_rotate %55 by %c21_i32_26 dim 0 : vector<24x128xf32>, i32 -> vector<24x128xf32>
    %57 = arith.addf %55, %56 : vector<24x128xf32>
    %c3_i32_27 = arith.constant 3 : i32
    %58 = tpu.dynamic_rotate %55 by %c3_i32_27 dim 0 : vector<24x128xf32>, i32 -> vector<24x128xf32>
    %59 = arith.addf %57, %58 : vector<24x128xf32>
    %cst_28 = arith.constant dense<0.000000e+00> : vector<24x128xf32>
    %60 = tpu.matmul %59, %0, %cst_28 {dimension_numbers = #tpu.dot_dimension_numbers<[1], [0], [0], [1], [0, 0, 1, 1], [], []>, precision = #tpu.contract_precision<fp32>} : vector<24x128xf32>, vector<128x128xf32>, vector<24x128xf32> -> vector<24x128xf32>
    %61 = arith.mulf %13, %22 : vector<24x128xf32>
    %cst_29 = arith.constant 0.0123456791 : f32
    %62 = vector.broadcast %cst_29 : f32 to vector<24x128xf32>
    %63 = arith.mulf %61, %62 : vector<24x128xf32>
    %64 = arith.subf %60, %63 : vector<24x128xf32>
    %65 = arith.mulf %64, %64 : vector<24x128xf32>
    %66 = arith.mulf %36, %50 : vector<24x128xf32>
    %cst_30 = arith.constant 9.99999974E-6 : f32
    %67 = vector.broadcast %cst_30 : f32 to vector<24x128xf32>
    %68 = arith.addf %66, %67 : vector<24x128xf32>
    %69 = tpu.reciprocal %68 {approx = true} : vector<24x128xf32> -> vector<24x128xf32>
    %70 = arith.mulf %65, %69 : vector<24x128xf32>
    %71 = vector.extract_strided_slice %70 {offsets = [0, 0], sizes = [8, 128], strides = [1, 1]} : vector<24x128xf32> to vector<8x128xf32>
    %c0_31 = arith.constant 0 : index
    %c0_32 = arith.constant 0 : index
    %72 = vector.load %arg1[%c0_31, %c0_32] : memref<24x128xf32, #tpu.memory_space<vmem>>, vector<8x128xf32>
    %73 = arith.mulf %71, %72 : vector<8x128xf32>
    %74 = vector.extract_strided_slice %70 {offsets = [8, 0], sizes = [8, 128], strides = [1, 1]} : vector<24x128xf32> to vector<8x128xf32>
    %c8 = arith.constant 8 : index
    %c0_33 = arith.constant 0 : index
    %75 = vector.load %arg1[%c8, %c0_33] : memref<24x128xf32, #tpu.memory_space<vmem>>, vector<8x128xf32>
    %76 = arith.mulf %74, %75 : vector<8x128xf32>
    %77 = vector.extract_strided_slice %70 {offsets = [16, 0], sizes = [8, 128], strides = [1, 1]} : vector<24x128xf32> to vector<8x128xf32>
    %c16 = arith.constant 16 : index
    %c0_34 = arith.constant 0 : index
    %78 = vector.load %arg1[%c16, %c0_34] : memref<24x128xf32, #tpu.memory_space<vmem>>, vector<8x128xf32>
    %79 = arith.mulf %77, %78 : vector<8x128xf32>
    %80 = arith.addf %73, %76 : vector<8x128xf32>
    %81 = arith.addf %80, %79 : vector<8x128xf32>
    %c0_35 = arith.constant 0 : index
    %c0_36 = arith.constant 0 : index
    %82 = vector.load %arg5[%c0_35, %c0_36] : memref<8x128xf32, #tpu.memory_space<vmem>>, vector<8x128xf32>
    tpu.vector_store %arg5[%c0_35, %c0_36], %81 {strides = array<i32>} : memref<8x128xf32, #tpu.memory_space<vmem>>, vector<8x128xf32>,
    return
  }
  func.func @transform_0(%arg0: i32) -> (i32, i32) {
    %c0_i32 = arith.constant 0 : i32
    %c0_i32_0 = arith.constant 0 : i32
    %c0_i32_1 = arith.constant 0 : i32
    return %c0_i32, %c0_i32_0 : i32, i32
  }
  func.func @transform_1(%arg0: i32) -> (i32, i32) {
    %c0_i32 = arith.constant 0 : i32
    %c0_i32_0 = arith.constant 0 : i32
    %c0_i32_1 = arith.constant 0 : i32
    return %c0_i32, %c0_i32_0 : i32, i32
  }
  func.func @transform_2(%arg0: i32) -> (i32, i32, i32) {
    %c0_i32 = arith.constant 0 : i32
    %c0_i32_0 = arith.constant 0 : i32
    %c0_i32_1 = arith.constant 0 : i32
    return %arg0, %c0_i32, %c0_i32_0 : i32, i32, i32
  }
  func.func @transform_3(%arg0: i32) -> (i32, i32, i32) {
    %c0_i32 = arith.constant 0 : i32
    %c0_i32_0 = arith.constant 0 : i32
    %c0_i32_1 = arith.constant 0 : i32
    return %arg0, %c0_i32, %c0_i32_0 : i32, i32, i32
  }
  func.func @transform_4(%arg0: i32) -> (i32, i32) {
    %c0_i32 = arith.constant 0 : i32
    %c0_i32_0 = arith.constant 0 : i32
    return %arg0, %c0_i32 : i32, i32
  }
}

</mosaic_0001>

<llo_original>
// kernel: tpu_custom_call.1
$region0: #{tpu_custom_call.1}
  #allocation0 [shape = 'u32[]', space=smem, size = 0x4, offset = 0x4, fixed_abs, tag = 'smem constant byte address 0x4 - core index']
  #allocation1 [shape = 'u32[72,128]{1,0:T(1,128)}', space=vmem, size = 0x9000, scoped, tag = 'internal scratch']
  %s0 = inlined_call_operand.hbm [shape: f32[24,128], index: 0, kind: input, shape index: {}]
  %s1 = inlined_call_operand.hbm [shape: f32[128,128], index: 1, kind: input, shape index: {}]
  %s2 = inlined_call_operand.hbm [shape: f32[2,24,128], index: 2, kind: input, shape index: {}]
  %s3 = inlined_call_operand.hbm [shape: f32[2,24,128], index: 3, kind: input, shape index: {}]
  %s4 = inlined_call_operand.hbm [shape: f32[16,128], index: 4, kind: output, shape index: {}]
  %s5 = sld [smem:[#allocation0]]
  $region65: #{tpu_custom_call.1} parent=0
    _
  %s7 = ssub.s32 1, %s5
  %s8 = scalar_select 0, %s7, %s5
  $region1: #{tpu_custom_call.1} parent=0
    #allocation2 [shape = 'u8[12288]{0}', space=vmem, size = 0x3000, scoped, tag = 'input window, operand 0, single buffered']
    #allocation3 [shape = 's32[2]{0}', space=sflag, size = 0x8, scoped, tag = 'scoped memory for tpu_custom_call.1']
    #allocation4 [shape = 's32[2]{0}', space=sflag, size = 0x8, scoped, tag = 'scoped memory for tpu_custom_call.1']
    #allocation5 [shape = 'u8[65536]{0}', space=vmem, size = 0x10000, scoped, tag = 'input window, operand 1, single buffered']
    #allocation6 [shape = 's32[1]{0}', space=sflag, size = 0x4, scoped, tag = 'scoped memory for tpu_custom_call.1']
    #allocation7 [shape = 'u8[24576]{0}', space=vmem, size = 0x6000, scoped, tag = 'input window, operand 2']
    #allocation8 [shape = 'u8[24576]{0}', space=vmem, size = 0x6000, scoped, tag = 'input window, operand 3']
    #allocation9 [shape = 'u8[8192]{0}', space=vmem, size = 0x2000, scoped, tag = 'output window, operand 0']
    %9 = vsyncpa [#allocation3], 0
    %10 = vsyncpa [#allocation6], 0
    %11 = vsyncpa [#allocation4], 0
    %s12 = scalar_lea.sflag [#allocation4], 1
    %13 = vsyncpa %s12, 0
    loop: start=0, step=1, limit=4
    $region2: #{tpu_custom_call.1} parent=1 // loop_pre_header
      _
    $region3: #{tpu_custom_call.1} parent=1 // loop_header
      %s15 = sphi 0, %s19
      %p16 = scmp.ge.s32.totalorder %s15, 4
      %s23 = sphi 0, %s23
      %s25 = sphi 0, %s23
      %s26 = sphi 0, %s25
      %s40 = sphi 0, %s26
      %s44 = sphi 0, %s44
      %s46 = sphi 0, %s44
      %s47 = sphi 0, %s46
      %s61 = sphi 0, %s47
      %s67 = sphi 0, %s69
      %s70 = sphi 0, %s67
      %s71 = sphi 0, %s70
      %s87 = sphi 0, %s71
      %s93 = sphi 0, %s95
      %s96 = sphi 0, %s93
      %s97 = sphi 0, %s96
      %s113 = sphi 0, %s97
      %s119 = sphi 0, %s121
      %s122 = sphi 0, %s119
      %s123 = sphi 0, %s122
      %s139 = sphi 0, %s123
    $region4: #{tpu_custom_call.1} parent=1 // loop_header_branch
      %18 = sbr.rel (%p16) target = $region8
    $region5: #{tpu_custom_call.1} parent=1 // loop_body
      %s20 = ssub.s32 %s15, 1
      %s21 = ssub.s32 %s15, 2
      %s22 = sadd.s32 %s15, 1
      %s24 = sadd.s32 %s23, 1
      %p27 = scmp.eq.s32.totalorder %s15, 1
      %p28 = scmp.ne.s32.totalorder %s23, %s25
      %p29 = scmp.eq.s32.totalorder %s15, 0
      %p30 = por %p28, %p29
      %p31 = scmp.ne.s32.totalorder %s23, %s25
      %p32 = scmp.eq.s32.totalorder %s20, 1
      %p33 = por %p31, %p32
      %p34 = scmp.ne.s32.totalorder %s25, %s26
      %p35 = scmp.eq.s32.totalorder %s20, 0
      %p36 = por %p34, %p35
      %p37 = scmp.ne.s32.totalorder %s25, %s26
      %p38 = scmp.eq.s32.totalorder %s21, 1
      %p39 = por %p37, %p38
      %p41 = scmp.ne.s32.totalorder %s26, %s40
      %p42 = scmp.eq.s32.totalorder %s21, 0
      %p43 = por %p41, %p42
      %s45 = sadd.s32 %s44, 1
      %p48 = scmp.eq.s32.totalorder %s15, 1
      %p49 = scmp.ne.s32.totalorder %s44, %s46
      %p50 = scmp.eq.s32.totalorder %s15, 0
      %p51 = por %p49, %p50
      %p52 = scmp.ne.s32.totalorder %s44, %s46
      %p53 = scmp.eq.s32.totalorder %s20, 1
      %p54 = por %p52, %p53
      %p55 = scmp.ne.s32.totalorder %s46, %s47
      %p56 = scmp.eq.s32.totalorder %s20, 0
      %p57 = por %p55, %p56
      %p58 = scmp.ne.s32.totalorder %s46, %s47
      %p59 = scmp.eq.s32.totalorder %s21, 1
      %p60 = por %p58, %p59
      %p62 = scmp.ne.s32.totalorder %s47, %s61
      %p63 = scmp.eq.s32.totalorder %s21, 0
      %p64 = por %p62, %p63
      %s65 = ssub.s32 %s15, %s22
      %p66 = scmp.eq.s32.totalorder %s65, 0
      %s68 = sadd.s32 %s67, 1
      %s69 = scalar_select %p66, %s67, %s68
      %p72 = pneg %p66
      %p73 = scmp.eq.s32.totalorder %s15, 1
      %p74 = por %p72, %p73
      %p75 = scmp.ne.s32.totalorder %s67, %s70
      %p76 = scmp.eq.s32.totalorder %s15, 0
      %p77 = por %p75, %p76
      %p78 = scmp.ne.s32.totalorder %s67, %s70
      %p79 = scmp.eq.s32.totalorder %s20, 1
      %p80 = por %p78, %p79
      %p81 = scmp.ne.s32.totalorder %s70, %s71
      %p82 = scmp.eq.s32.totalorder %s20, 0
      %p83 = por %p81, %p82
      %p84 = scmp.ne.s32.totalorder %s70, %s71
      %p85 = scmp.eq.s32.totalorder %s21, 1
      %p86 = por %p84, %p85
      %p88 = scmp.ne.s32.totalorder %s71, %s87
      %p89 = scmp.eq.s32.totalorder %s21, 0
      %p90 = por %p88, %p89
      %s91 = ssub.s32 %s15, %s22
      %p92 = scmp.eq.s32.totalorder %s91, 0
      %s94 = sadd.s32 %s93, 1
      %s95 = scalar_select %p92, %s93, %s94
      %p98 = pneg %p92
      %p99 = scmp.eq.s32.totalorder %s15, 1
      %p100 = por %p98, %p99
      %p101 = scmp.ne.s32.totalorder %s93, %s96
      %p102 = scmp.eq.s32.totalorder %s15, 0
      %p103 = por %p101, %p102
      %p104 = scmp.ne.s32.totalorder %s93, %s96
      %p105 = scmp.eq.s32.totalorder %s20, 1
      %p106 = por %p104, %p105
      %p107 = scmp.ne.s32.totalorder %s96, %s97
      %p108 = scmp.eq.s32.totalorder %s20, 0
      %p109 = por %p107, %p108
      %p110 = scmp.ne.s32.totalorder %s96, %s97
      %p111 = scmp.eq.s32.totalorder %s21, 1
      %p112 = por %p110, %p111
      %p114 = scmp.ne.s32.totalorder %s97, %s113
      %p115 = scmp.eq.s32.totalorder %s21, 0
      %p116 = por %p114, %p115
      %s117 = ssub.s32 %s15, %s22
      %p118 = scmp.eq.s32.totalorder %s117, 0
      %s120 = sadd.s32 %s119, 1
      %s121 = scalar_select %p118, %s119, %s120
      %p124 = pneg %p118
      %p125 = scmp.eq.s32.totalorder %s15, 1
      %p126 = por %p124, %p125
      %p127 = scmp.ne.s32.totalorder %s119, %s122
      %p128 = scmp.eq.s32.totalorder %s15, 0
      %p129 = por %p127, %p128
      %p130 = scmp.ne.s32.totalorder %s119, %s122
      %p131 = scmp.eq.s32.totalorder %s20, 1
      %p132 = por %p130, %p131
      %p133 = scmp.ne.s32.totalorder %s122, %s123
      %p134 = scmp.eq.s32.totalorder %s20, 0
      %p135 = por %p133, %p134
      %p136 = scmp.ne.s32.totalorder %s122, %s123
      %p137 = scmp.eq.s32.totalorder %s21, 1
      %p138 = por %p136, %p137
      %p140 = scmp.ne.s32.totalorder %s123, %s139
      %p141 = scmp.eq.s32.totalorder %s21, 0
      %p142 = por %p140, %p141
      %p143 = scmp.le.s32.totalorder 1, %s15
      %p144 = scmp.lt.s32.totalorder %s15, 3
      %p145 = pnand %p143, %p144
      %p146 = pneg %p145
      // Predicated region
      $region9: #{tpu_custom_call.1} parent=5 // pred_check
        _
      $region10: #{tpu_custom_call.1} parent=5 // pred_check_branch
        %148 = sbr.rel (%p145) target = $region12
      $region11: #{tpu_custom_call.1} parent=5 // pred_region
        %s149 = ssub.s32 %s15, 1
        // Predicated region
        $region13: #{tpu_custom_call.1} parent=11 // pred_check
          %p150 = pneg %p36
        $region14: #{tpu_custom_call.1} parent=11 // pred_check_branch
          %152 = sbr.rel (%p150) target = $region16
        $region15: #{tpu_custom_call.1} parent=11 // pred_region
          %154 = vsyncadd [#allocation3], 0
          %s155 = sshll.u32 %s0, 4
          %s156 = int_to_ptr.hbm [resolvable:$true] %s155
          %s157 = sshll.u32 [#allocation2], 4
          %s158 = int_to_ptr.vmem [resolvable:$true] %s157
          %163 = dma.hbm_to_vmem [thread:$0]  %s156, 384, %s158, [#allocation3], 128, 128, 8
        $region16: #{tpu_custom_call.1} parent=11 // pred_fallthru
          _
        // Predicated region
        $region17: #{tpu_custom_call.1} parent=11 // pred_check
          %p164 = pneg %p57
        $region18: #{tpu_custom_call.1} parent=11 // pred_check_branch
          %166 = sbr.rel (%p164) target = $region20
        $region19: #{tpu_custom_call.1} parent=11 // pred_region
          %168 = vsyncadd [#allocation6], 0
          %s169 = sshll.u32 %s1, 4
          %s170 = int_to_ptr.hbm [resolvable:$true] %s169
          %s171 = sshll.u32 [#allocation5], 4
          %s172 = int_to_ptr.vmem [resolvable:$true] %s171
          %177 = dma.hbm_to_vmem [thread:$0]  %s170, 2048, %s172, [#allocation6], 128, 128, 8
        $region20: #{tpu_custom_call.1} parent=11 // pred_fallthru
          _
      $region12: #{tpu_custom_call.1} parent=5 // pred_fallthru
        _
      %p178 = scmp.lt.s32.totalorder %s15, 2
      // Predicated region
      $region21: #{tpu_custom_call.1} parent=5 // pred_check
        %p179 = pneg %p178
      $region22: #{tpu_custom_call.1} parent=5 // pred_check_branch
        %181 = sbr.rel (%p179) target = $region24
      $region23: #{tpu_custom_call.1} parent=5 // pred_region
        // Predicated region
        $region25: #{tpu_custom_call.1} parent=23 // pred_check
          %p182 = pneg %p77
        $region26: #{tpu_custom_call.1} parent=23 // pred_check_branch
          %184 = sbr.rel (%p182) target = $region28
        $region27: #{tpu_custom_call.1} parent=23 // pred_region
          %s185 = sand.u32 %s15, 1
          %s186 = scalar_lea.sflag [#allocation3], %s185
          %s187 = sand.u32 %s67, 1
          %s188 = smul.addr %s187, 24
          %s189 = scalar_lea.vmem [#allocation7], %s188
          %191 = vsyncadd %s186, 0
          %s192 = smul.addr %s15, 3
          %s193 = smul.addr %s192, 8
          %s194 = scalar_lea.hbm %s2, %s193
          %s195 = sshll.u32 %s194, 4
          %s196 = int_to_ptr.hbm [resolvable:$true] %s195
          %s197 = sshll.u32 %s189, 4
          %s198 = int_to_ptr.vmem [resolvable:$true] %s197
          %203 = dma.hbm_to_vmem [thread:$0]  %s196, 384, %s198, %s186, 128, 128, 8
        $region28: #{tpu_custom_call.1} parent=23 // pred_fallthru
          _
        // Predicated region
        $region29: #{tpu_custom_call.1} parent=23 // pred_check
          %p204 = pneg %p103
        $region30: #{tpu_custom_call.1} parent=23 // pred_check_branch
          %206 = sbr.rel (%p204) target = $region32
        $region31: #{tpu_custom_call.1} parent=23 // pred_region
          %s207 = sand.u32 %s15, 1
          %s208 = scalar_lea.sflag [#allocation3], %s207
          %s209 = sand.u32 %s93, 1
          %s210 = smul.addr %s209, 24
          %s211 = scalar_lea.vmem [#allocation8], %s210
          %213 = vsyncadd %s208, 0
          %s214 = smul.addr %s15, 3
          %s215 = smul.addr %s214, 8
          %s216 = scalar_lea.hbm %s3, %s215
          %s217 = sshll.u32 %s216, 4
          %s218 = int_to_ptr.hbm [resolvable:$true] %s217
          %s219 = sshll.u32 %s211, 4
          %s220 = int_to_ptr.vmem [resolvable:$true] %s219
          %225 = dma.hbm_to_vmem [thread:$0]  %s218, 384, %s220, %s208, 128, 128, 8
        $region32: #{tpu_custom_call.1} parent=23 // pred_fallthru
          _
      $region24: #{tpu_custom_call.1} parent=5 // pred_fallthru
        _
      %p226 = scmp.le.s32.totalorder 1, %s15
      %p227 = scmp.lt.s32.totalorder %s15, 3
      %p228 = pnand %p226, %p227
      %p229 = pneg %p228
      // Predicated region
      $region33: #{tpu_custom_call.1} parent=5 // pred_check
        _
      $region34: #{tpu_custom_call.1} parent=5 // pred_check_branch
        %231 = sbr.rel (%p228) target = $region36
      $region35: #{tpu_custom_call.1} parent=5 // pred_region
        %s232 = ssub.s32 %s15, 1
        // Predicated region
        $region37: #{tpu_custom_call.1} parent=35 // pred_check
          %p233 = pneg %p36
        $region38: #{tpu_custom_call.1} parent=35 // pred_check_branch
          %235 = sbr.rel (%p233) target = $region40
        $region39: #{tpu_custom_call.1} parent=35 // pred_region
          %237 = dma.done [#allocation3], 384
        $region40: #{tpu_custom_call.1} parent=35 // pred_fallthru
          _
        // Predicated region
        $region41: #{tpu_custom_call.1} parent=35 // pred_check
          %p238 = pneg %p57
        $region42: #{tpu_custom_call.1} parent=35 // pred_check_branch
          %240 = sbr.rel (%p238) target = $region44
        $region43: #{tpu_custom_call.1} parent=35 // pred_region
          %242 = dma.done [#allocation6], 2048
        $region44: #{tpu_custom_call.1} parent=35 // pred_fallthru
          _
        %s243 = sand.u32 %s20, 1
        %s244 = scalar_lea.sflag [#allocation3], %s243
        %s245 = sand.u32 %s70, 1
        %s246 = smul.addr %s245, 24
        %s247 = scalar_lea.vmem [#allocation7], %s246
        // Predicated region
        $region45: #{tpu_custom_call.1} parent=35 // pred_check
          %p248 = pneg %p83
        $region46: #{tpu_custom_call.1} parent=35 // pred_check_branch
          %250 = sbr.rel (%p248) target = $region48
        $region47: #{tpu_custom_call.1} parent=35 // pred_region
          %252 = dma.done %s244, 384
        $region48: #{tpu_custom_call.1} parent=35 // pred_fallthru
          _
        %s253 = sand.u32 %s20, 1
        %s254 = scalar_lea.sflag [#allocation3], %s253
        %s255 = sand.u32 %s96, 1
        %s256 = smul.addr %s255, 24
        %s257 = scalar_lea.vmem [#allocation8], %s256
        // Predicated region
        $region49: #{tpu_custom_call.1} parent=35 // pred_check
          %p258 = pneg %p109
        $region50: #{tpu_custom_call.1} parent=35 // pred_check_branch
          %260 = sbr.rel (%p258) target = $region52
        $region51: #{tpu_custom_call.1} parent=35 // pred_region
          %262 = dma.done %s254, 384
        $region52: #{tpu_custom_call.1} parent=35 // pred_fallthru
          _
        %p263 = pneg %p36
        %p264 = pneg %p33
        %p265 = pneg %p57
        %p266 = pneg %p54
        %s267 = sand.u32 %s20, 1
        %s268 = scalar_lea.sflag [#allocation3], %s267
        %s269 = sand.u32 %s70, 1
        %s270 = smul.addr %s269, 24
        %s271 = scalar_lea.vmem [#allocation7], %s270
        %p272 = pneg %p83
        %p273 = pneg %p80
        %s274 = sand.u32 %s20, 1
        %s275 = scalar_lea.sflag [#allocation3], %s274
        %s276 = sand.u32 %s96, 1
        %s277 = smul.addr %s276, 24
        %s278 = scalar_lea.vmem [#allocation8], %s277
        %p279 = pneg %p109
        %p280 = pneg %p106
        %p281 = pneg %p135
        %p282 = pneg %p132
        %s283 = sand.u32 %s122, 1
        %s284 = scalar_lea.sflag [#allocation4], %s283
        %s285 = sand.u32 %s122, 1
        %s286 = smul.addr %s285, 8
        %s287 = scalar_lea.vmem [#allocation9], %s286
        %v288 = vld [vmem:[#allocation5] sm:$0xff]
        %v289 = vld [vmem:[#allocation5 + $0x8] sm:$0xff]
        %v290 = vld [vmem:[#allocation5 + $0x10] sm:$0xff]
        %v291 = vld [vmem:[#allocation5 + $0x18] sm:$0xff]
        %v292 = vld [vmem:[#allocation5 + $0x20] sm:$0xff]
        %v293 = vld [vmem:[#allocation5 + $0x28] sm:$0xff]
        %v294 = vld [vmem:[#allocation5 + $0x30] sm:$0xff]
        %v295 = vld [vmem:[#allocation5 + $0x38] sm:$0xff]
        %v296 = vld [vmem:[#allocation5 + $0x40] sm:$0xff]
        %v297 = vld [vmem:[#allocation5 + $0x48] sm:$0xff]
        %v298 = vld [vmem:[#allocation5 + $0x50] sm:$0xff]
        %v299 = vld [vmem:[#allocation5 + $0x58] sm:$0xff]
        %v300 = vld [vmem:[#allocation5 + $0x60] sm:$0xff]
        %v301 = vld [vmem:[#allocation5 + $0x68] sm:$0xff]
        %v302 = vld [vmem:[#allocation5 + $0x70] sm:$0xff]
        %v303 = vld [vmem:[#allocation5 + $0x78] sm:$0xff]
        %v304 = vld [vmem:[%s247] sm:$0xff]
        %v305 = vld [vmem:[%s247 + $0x8] sm:$0xff]
        %v306 = vld [vmem:[%s247 + $0x10] sm:$0xff]
        %v307 = vld [vmem:[%s257] sm:$0xff]
        %v308 = vld [vmem:[%s257 + $0x8] sm:$0xff]
        %v309 = vld [vmem:[%s257 + $0x10] sm:$0xff]
        %v310 = vrot.slane %v304, 1
        %v311 = vrot.slane %v305, 1
        %v312 = vrot.slane %v306, 1
        %v313 = vlaneseq
        %v314 = vshrl.u32 %v313, 7
        %vm315 = vcmp.lt.s32.totalorder %v314, 7
        %v316 = vsel %vm315, %v311, %v312
        %v317 = vsel %vm315, %v310, %v311
        %v318 = vsel %vm315, %v312, %v310
        %v319 = vadd.f32 %v304, %v317
        %v320 = vadd.f32 %v305, %v316
        %v321 = vadd.f32 %v306, %v318
        %v322 = vrot.slane %v304, 7
        %v323 = vrot.slane %v305, 7
        %v324 = vrot.slane %v306, 7
        %vm325 = vcmp.lt.s32.totalorder %v314, 1
        %v326 = vsel %vm325, %v323, %v324
        %v327 = vsel %vm325, %v322, %v323
        %v328 = vsel %vm325, %v324, %v322
        %v329 = vadd.f32 %v319, %v328
        %v330 = vadd.f32 %v320, %v327
        %v331 = vadd.f32 %v321, %v326
        %v332 = vrot.slane %v329, 3
        %v333 = vrot.slane %v330, 3
        %v334 = vrot.slane %v331, 3
        %vm335 = vcmp.lt.s32.totalorder %v314, 5
        %v336 = vsel %vm335, %v333, %v334
        %v337 = vsel %vm335, %v332, %v333
        %v338 = vsel %vm335, %v334, %v332
        %v339 = vadd.f32 %v329, %v337
        %v340 = vadd.f32 %v330, %v336
        %v341 = vadd.f32 %v331, %v338
        %v342 = vrot.slane %v329, 5
        %v343 = vrot.slane %v330, 5
        %v344 = vrot.slane %v331, 5
        %vm345 = vcmp.lt.s32.totalorder %v314, 3
        %v346 = vsel %vm345, %v343, %v344
        %v347 = vsel %vm345, %v342, %v343
        %v348 = vsel %vm345, %v344, %v342
        %v349 = vadd.f32 %v339, %v348
        %v350 = vadd.f32 %v340, %v347
        %v351 = vadd.f32 %v341, %v346
        %v352 = vand.u32 %v303, 4294901760
        %353 = vmatpush.msra.mxu0 %v352
        %v354 = vand.u32 %v302, 4294901760
        %355 = vmatpush.msra.mxu0 %v354
        %v356 = vand.u32 %v301, 4294901760
        %357 = vmatpush.msra.mxu0 %v356
        %v358 = vand.u32 %v300, 4294901760
        %359 = vmatpush.msra.mxu0 %v358
        %v360 = vand.u32 %v299, 4294901760
        %361 = vmatpush.msra.mxu0 %v360
        %v362 = vand.u32 %v298, 4294901760
        %363 = vmatpush.msra.mxu0 %v362
        %v364 = vand.u32 %v297, 4294901760
        %365 = vmatpush.msra.mxu0 %v364
        %v366 = vand.u32 %v296, 4294901760
        %367 = vmatpush.msra.mxu0 %v366
        %v368 = vand.u32 %v295, 4294901760
        %369 = vmatpush.msra.mxu0 %v368
        %v370 = vand.u32 %v294, 4294901760
        %371 = vmatpush.msra.mxu0 %v370
        %v372 = vand.u32 %v293, 4294901760
        %373 = vmatpush.msra.mxu0 %v372
        %v374 = vand.u32 %v292, 4294901760
        %375 = vmatpush.msra.mxu0 %v374
        %v376 = vand.u32 %v291, 4294901760
        %377 = vmatpush.msra.mxu0 %v376
        %v378 = vand.u32 %v290, 4294901760
        %379 = vmatpush.msra.mxu0 %v378
        %v380 = vand.u32 %v289, 4294901760
        %381 = vmatpush.msra.mxu0 %v380
        %v382 = vand.u32 %v288, 4294901760
        %383 = vmatpush.msra.mxu0 %v382
        %v384 = vand.u32 %v349, 4294901760
        %v385 = vsub.f32 %v349, %v384
        %v386 = vand.u32 %v385, 4294901760
        %v387 = vsub.f32 %v385, %v386
        %v388 = vand.u32 %v387, 4294901760
        %389 = vmatmul.f32.gmra.mxu0 %v388
        %v390 = vpop.f32.mrf.mxu0
        %v391 = vadd.f32 0.0, %v390
        %v392 = vand.u32 %v350, 4294901760
        %v393 = vsub.f32 %v350, %v392
        %v394 = vand.u32 %v393, 4294901760
        %v395 = vsub.f32 %v393, %v394
        %v396 = vand.u32 %v395, 4294901760
        %397 = vmatmul.f32.gmra.mxu0 %v396
        %v398 = vpop.f32.mrf.mxu0
        %v399 = vadd.f32 0.0, %v398
        %v400 = vand.u32 %v351, 4294901760
        %v401 = vsub.f32 %v351, %v400
        %v402 = vand.u32 %v401, 4294901760
        %v403 = vsub.f32 %v401, %v402
        %v404 = vand.u32 %v403, 4294901760
        %405 = vmatmul.f32.gmra.mxu0 %v404
        %v406 = vpop.f32.mrf.mxu0
        %v407 = vadd.f32 0.0, %v406
        %408 = vdwg.mxu0
        %v409 = vand.u32 %v303, 4294901760
        %v410 = vsub.f32 %v303, %v409
        %v411 = vand.u32 %v410, 4294901760
        %v412 = vsub.f32 %v410, %v411
        %v413 = vand.u32 %v412, 4294901760
        %414 = vmatpush.msra.mxu0 %v413
        %v415 = vand.u32 %v302, 4294901760
        %v416 = vsub.f32 %v302, %v415
        %v417 = vand.u32 %v416, 4294901760
        %v418 = vsub.f32 %v416, %v417
        %v419 = vand.u32 %v418, 4294901760
        %420 = vmatpush.msra.mxu0 %v419
        %v421 = vand.u32 %v301, 4294901760
        %v422 = vsub.f32 %v301, %v421
        %v423 = vand.u32 %v422, 4294901760
        %v424 = vsub.f32 %v422, %v423
        %v425 = vand.u32 %v424, 4294901760
        %426 = vmatpush.msra.mxu0 %v425
        %v427 = vand.u32 %v300, 4294901760
        %v428 = vsub.f32 %v300, %v427
        %v429 = vand.u32 %v428, 4294901760
        %v430 = vsub.f32 %v428, %v429
        %v431 = vand.u32 %v430, 4294901760
        %432 = vmatpush.msra.mxu0 %v431
        %v433 = vand.u32 %v299, 4294901760
        %v434 = vsub.f32 %v299, %v433
        %v435 = vand.u32 %v434, 4294901760
        %v436 = vsub.f32 %v434, %v435
        %v437 = vand.u32 %v436, 4294901760
        %438 = vmatpush.msra.mxu0 %v437
        %v439 = vand.u32 %v298, 4294901760
        %v440 = vsub.f32 %v298, %v439
        %v441 = vand.u32 %v440, 4294901760
        %v442 = vsub.f32 %v440, %v441
        %v443 = vand.u32 %v442, 4294901760
        %444 = vmatpush.msra.mxu0 %v443
        %v445 = vand.u32 %v297, 4294901760
        %v446 = vsub.f32 %v297, %v445
        %v447 = vand.u32 %v446, 4294901760
        %v448 = vsub.f32 %v446, %v447
        %v449 = vand.u32 %v448, 4294901760
        %450 = vmatpush.msra.mxu0 %v449
        %v451 = vand.u32 %v296, 4294901760
        %v452 = vsub.f32 %v296, %v451
        %v453 = vand.u32 %v452, 4294901760
        %v454 = vsub.f32 %v452, %v453
        %v455 = vand.u32 %v454, 4294901760
        %456 = vmatpush.msra.mxu0 %v455
        %v457 = vand.u32 %v295, 4294901760
        %v458 = vsub.f32 %v295, %v457
        %v459 = vand.u32 %v458, 4294901760
        %v460 = vsub.f32 %v458, %v459
        %v461 = vand.u32 %v460, 4294901760
        %462 = vmatpush.msra.mxu0 %v461
        %v463 = vand.u32 %v294, 4294901760
        %v464 = vsub.f32 %v294, %v463
        %v465 = vand.u32 %v464, 4294901760
        %v466 = vsub.f32 %v464, %v465
        %v467 = vand.u32 %v466, 4294901760
        %468 = vmatpush.msra.mxu0 %v467
        %v469 = vand.u32 %v293, 4294901760
        %v470 = vsub.f32 %v293, %v469
        %v471 = vand.u32 %v470, 4294901760
        %v472 = vsub.f32 %v470, %v471
        %v473 = vand.u32 %v472, 4294901760
        %474 = vmatpush.msra.mxu0 %v473
        %v475 = vand.u32 %v292, 4294901760
        %v476 = vsub.f32 %v292, %v475
        %v477 = vand.u32 %v476, 4294901760
        %v478 = vsub.f32 %v476, %v477
        %v479 = vand.u32 %v478, 4294901760
        %480 = vmatpush.msra.mxu0 %v479
        %v481 = vand.u32 %v291, 4294901760
        %v482 = vsub.f32 %v291, %v481
        %v483 = vand.u32 %v482, 4294901760
        %v484 = vsub.f32 %v482, %v483
        %v485 = vand.u32 %v484, 4294901760
        %486 = vmatpush.msra.mxu0 %v485
        %v487 = vand.u32 %v290, 4294901760
        %v488 = vsub.f32 %v290, %v487
        %v489 = vand.u32 %v488, 4294901760
        %v490 = vsub.f32 %v488, %v489
        %v491 = vand.u32 %v490, 4294901760
        %492 = vmatpush.msra.mxu0 %v491
        %v493 = vand.u32 %v289, 4294901760
        %v494 = vsub.f32 %v289, %v493
        %v495 = vand.u32 %v494, 4294901760
        %v496 = vsub.f32 %v494, %v495
        %v497 = vand.u32 %v496, 4294901760
        %498 = vmatpush.msra.mxu0 %v497
        %v499 = vand.u32 %v288, 4294901760
        %v500 = vsub.f32 %v288, %v499
        %v501 = vand.u32 %v500, 4294901760
        %v502 = vsub.f32 %v500, %v501
        %v503 = vand.u32 %v502, 4294901760
        %504 = vmatpush.msra.mxu0 %v503
        %v505 = vand.u32 %v349, 4294901760
        %506 = vmatmul.f32.gmra.mxu0 %v505
        %v507 = vpop.f32.mrf.mxu0
        %v508 = vadd.f32 %v391, %v507
        %v509 = vand.u32 %v350, 4294901760
        %510 = vmatmul.f32.gmra.mxu0 %v509
        %v511 = vpop.f32.mrf.mxu0
        %v512 = vadd.f32 %v399, %v511
        %v513 = vand.u32 %v351, 4294901760
        %514 = vmatmul.f32.gmra.mxu0 %v513
        %v515 = vpop.f32.mrf.mxu0
        %v516 = vadd.f32 %v407, %v515
        %517 = vdwg.mxu0
        %v518 = vand.u32 %v303, 4294901760
        %v519 = vsub.f32 %v303, %v518
        %520 = vmatpush.msra.mxu0 %v519
        %v521 = vand.u32 %v302, 4294901760
        %v522 = vsub.f32 %v302, %v521
        %523 = vmatpush.msra.mxu0 %v522
        %v524 = vand.u32 %v301, 4294901760
        %v525 = vsub.f32 %v301, %v524
        %526 = vmatpush.msra.mxu0 %v525
        %v527 = vand.u32 %v300, 4294901760
        %v528 = vsub.f32 %v300, %v527
        %529 = vmatpush.msra.mxu0 %v528
        %v530 = vand.u32 %v299, 4294901760
        %v531 = vsub.f32 %v299, %v530
        %532 = vmatpush.msra.mxu0 %v531
        %v533 = vand.u32 %v298, 4294901760
        %v534 = vsub.f32 %v298, %v533
        %535 = vmatpush.msra.mxu0 %v534
        %v536 = vand.u32 %v297, 4294901760
        %v537 = vsub.f32 %v297, %v536
        %538 = vmatpush.msra.mxu0 %v537
        %v539 = vand.u32 %v296, 4294901760
        %v540 = vsub.f32 %v296, %v539
        %541 = vmatpush.msra.mxu0 %v540
        %v542 = vand.u32 %v295, 4294901760
        %v543 = vsub.f32 %v295, %v542
        %544 = vmatpush.msra.mxu0 %v543
        %v545 = vand.u32 %v294, 4294901760
        %v546 = vsub.f32 %v294, %v545
        %547 = vmatpush.msra.mxu0 %v546
        %v548 = vand.u32 %v293, 4294901760
        %v549 = vsub.f32 %v293, %v548
        %550 = vmatpush.msra.mxu0 %v549
        %v551 = vand.u32 %v292, 4294901760
        %v552 = vsub.f32 %v292, %v551
        %553 = vmatpush.msra.mxu0 %v552
        %v554 = vand.u32 %v291, 4294901760
        %v555 = vsub.f32 %v291, %v554
        %556 = vmatpush.msra.mxu0 %v555
        %v557 = vand.u32 %v290, 4294901760
        %v558 = vsub.f32 %v290, %v557
        %559 = vmatpush.msra.mxu0 %v558
        %v560 = vand.u32 %v289, 4294901760
        %v561 = vsub.f32 %v289, %v560
        %562 = vmatpush.msra.mxu0 %v561
        %v563 = vand.u32 %v288, 4294901760
        %v564 = vsub.f32 %v288, %v563
        %565 = vmatpush.msra.mxu0 %v564
        %v566 = vand.u32 %v349, 4294901760
        %v567 = vsub.f32 %v349, %v566
        %568 = vmatmul.f32.gmra.mxu0 %v567
        %v569 = vpop.f32.mrf.mxu0
        %v570 = vadd.f32 %v508, %v569
        %v571 = vand.u32 %v350, 4294901760
        %v572 = vsub.f32 %v350, %v571
        %573 = vmatmul.f32.gmra.mxu0 %v572
        %v574 = vpop.f32.mrf.mxu0
        %v575 = vadd.f32 %v512, %v574
        %v576 = vand.u32 %v351, 4294901760
        %v577 = vsub.f32 %v351, %v576
        %578 = vmatmul.f32.gmra.mxu0 %v577
        %v579 = vpop.f32.mrf.mxu0
        %v580 = vadd.f32 %v516, %v579
        %581 = vdwg.mxu0
        %v582 = vand.u32 %v303, 4294901760
        %583 = vmatpush.msra.mxu0 %v582
        %v584 = vand.u32 %v302, 4294901760
        %585 = vmatpush.msra.mxu0 %v584
        %v586 = vand.u32 %v301, 4294901760
        %587 = vmatpush.msra.mxu0 %v586
        %v588 = vand.u32 %v300, 4294901760
        %589 = vmatpush.msra.mxu0 %v588
        %v590 = vand.u32 %v299, 4294901760
        %591 = vmatpush.msra.mxu0 %v590
        %v592 = vand.u32 %v298, 4294901760
        %593 = vmatpush.msra.mxu0 %v592
        %v594 = vand.u32 %v297, 4294901760
        %595 = vmatpush.msra.mxu0 %v594
        %v596 = vand.u32 %v296, 4294901760
        %597 = vmatpush.msra.mxu0 %v596
        %v598 = vand.u32 %v295, 4294901760
        %599 = vmatpush.msra.mxu0 %v598
        %v600 = vand.u32 %v294, 4294901760
        %601 = vmatpush.msra.mxu0 %v600
        %v602 = vand.u32 %v293, 4294901760
        %603 = vmatpush.msra.mxu0 %v602
        %v604 = vand.u32 %v292, 4294901760
        %605 = vmatpush.msra.mxu0 %v604
        %v606 = vand.u32 %v291, 4294901760
        %607 = vmatpush.msra.mxu0 %v606
        %v608 = vand.u32 %v290, 4294901760
        %609 = vmatpush.msra.mxu0 %v608
        %v610 = vand.u32 %v289, 4294901760
        %611 = vmatpush.msra.mxu0 %v610
        %v612 = vand.u32 %v288, 4294901760
        %613 = vmatpush.msra.mxu0 %v612
        %v614 = vand.u32 %v349, 4294901760
        %v615 = vsub.f32 %v349, %v614
        %v616 = vand.u32 %v615, 4294901760
        %617 = vmatmul.f32.gmra.mxu0 %v616
        %v618 = vpop.f32.mrf.mxu0
        %v619 = vadd.f32 %v570, %v618
        %v620 = vand.u32 %v350, 4294901760
        %v621 = vsub.f32 %v350, %v620
        %v622 = vand.u32 %v621, 4294901760
        %623 = vmatmul.f32.gmra.mxu0 %v622
        %v624 = vpop.f32.mrf.mxu0
        %v625 = vadd.f32 %v575, %v624
        %v626 = vand.u32 %v351, 4294901760
        %v627 = vsub.f32 %v351, %v626
        %v628 = vand.u32 %v627, 4294901760
        %629 = vmatmul.f32.gmra.mxu0 %v628
        %v630 = vpop.f32.mrf.mxu0
        %v631 = vadd.f32 %v580, %v630
        %632 = vdwg.mxu0
        %v633 = vand.u32 %v303, 4294901760
        %v634 = vsub.f32 %v303, %v633
        %v635 = vand.u32 %v634, 4294901760
        %636 = vmatpush.msra.mxu0 %v635
        %v637 = vand.u32 %v302, 4294901760
        %v638 = vsub.f32 %v302, %v637
        %v639 = vand.u32 %v638, 4294901760
        %640 = vmatpush.msra.mxu0 %v639
        %v641 = vand.u32 %v301, 4294901760
        %v642 = vsub.f32 %v301, %v641
        %v643 = vand.u32 %v642, 4294901760
        %644 = vmatpush.msra.mxu0 %v643
        %v645 = vand.u32 %v300, 4294901760
        %v646 = vsub.f32 %v300, %v645
        %v647 = vand.u32 %v646, 4294901760
        %648 = vmatpush.msra.mxu0 %v647
        %v649 = vand.u32 %v299, 4294901760
        %v650 = vsub.f32 %v299, %v649
        %v651 = vand.u32 %v650, 4294901760
        %652 = vmatpush.msra.mxu0 %v651
        %v653 = vand.u32 %v298, 4294901760
        %v654 = vsub.f32 %v298, %v653
        %v655 = vand.u32 %v654, 4294901760
        %656 = vmatpush.msra.mxu0 %v655
        %v657 = vand.u32 %v297, 4294901760
        %v658 = vsub.f32 %v297, %v657
        %v659 = vand.u32 %v658, 4294901760
        %660 = vmatpush.msra.mxu0 %v659
        %v661 = vand.u32 %v296, 4294901760
        %v662 = vsub.f32 %v296, %v661
        %v663 = vand.u32 %v662, 4294901760
        %664 = vmatpush.msra.mxu0 %v663
        %v665 = vand.u32 %v295, 4294901760
        %v666 = vsub.f32 %v295, %v665
        %v667 = vand.u32 %v666, 4294901760
        %668 = vmatpush.msra.mxu0 %v667
        %v669 = vand.u32 %v294, 4294901760
        %v670 = vsub.f32 %v294, %v669
        %v671 = vand.u32 %v670, 4294901760
        %672 = vmatpush.msra.mxu0 %v671
        %v673 = vand.u32 %v293, 4294901760
        %v674 = vsub.f32 %v293, %v673
        %v675 = vand.u32 %v674, 4294901760
        %676 = vmatpush.msra.mxu0 %v675
        %v677 = vand.u32 %v292, 4294901760
        %v678 = vsub.f32 %v292, %v677
        %v679 = vand.u32 %v678, 4294901760
        %680 = vmatpush.msra.mxu0 %v679
        %v681 = vand.u32 %v291, 4294901760
        %v682 = vsub.f32 %v291, %v681
        %v683 = vand.u32 %v682, 4294901760
        %684 = vmatpush.msra.mxu0 %v683
        %v685 = vand.u32 %v290, 4294901760
        %v686 = vsub.f32 %v290, %v685
        %v687 = vand.u32 %v686, 4294901760
        %688 = vmatpush.msra.mxu0 %v687
        %v689 = vand.u32 %v289, 4294901760
        %v690 = vsub.f32 %v289, %v689
        %v691 = vand.u32 %v690, 4294901760
        %692 = vmatpush.msra.mxu0 %v691
        %v693 = vand.u32 %v288, 4294901760
        %v694 = vsub.f32 %v288, %v693
        %v695 = vand.u32 %v694, 4294901760
        %696 = vmatpush.msra.mxu0 %v695
        %v697 = vand.u32 %v349, 4294901760
        %698 = vmatmul.f32.gmra.mxu0 %v697
        %v699 = vpop.f32.mrf.mxu0
        %v700 = vadd.f32 %v619, %v699
        %v701 = vand.u32 %v350, 4294901760
        %702 = vmatmul.f32.gmra.mxu0 %v701
        %v703 = vpop.f32.mrf.mxu0
        %v704 = vadd.f32 %v625, %v703
        %v705 = vand.u32 %v351, 4294901760
        %706 = vmatmul.f32.gmra.mxu0 %v705
        %v707 = vpop.f32.mrf.mxu0
        %v708 = vadd.f32 %v631, %v707
        %709 = vdwg.mxu0
        %v710 = vand.u32 %v303, 4294901760
        %711 = vmatpush.msra.mxu0 %v710
        %v712 = vand.u32 %v302, 4294901760
        %713 = vmatpush.msra.mxu0 %v712
        %v714 = vand.u32 %v301, 4294901760
        %715 = vmatpush.msra.mxu0 %v714
        %v716 = vand.u32 %v300, 4294901760
        %717 = vmatpush.msra.mxu0 %v716
        %v718 = vand.u32 %v299, 4294901760
        %719 = vmatpush.msra.mxu0 %v718
        %v720 = vand.u32 %v298, 4294901760
        %721 = vmatpush.msra.mxu0 %v720
        %v722 = vand.u32 %v297, 4294901760
        %723 = vmatpush.msra.mxu0 %v722
        %v724 = vand.u32 %v296, 4294901760
        %725 = vmatpush.msra.mxu0 %v724
        %v726 = vand.u32 %v295, 4294901760
        %727 = vmatpush.msra.mxu0 %v726
        %v728 = vand.u32 %v294, 4294901760
        %729 = vmatpush.msra.mxu0 %v728
        %v730 = vand.u32 %v293, 4294901760
        %731 = vmatpush.msra.mxu0 %v730
        %v732 = vand.u32 %v292, 4294901760
        %733 = vmatpush.msra.mxu0 %v732
        %v734 = vand.u32 %v291, 4294901760
        %735 = vmatpush.msra.mxu0 %v734
        %v736 = vand.u32 %v290, 4294901760
        %737 = vmatpush.msra.mxu0 %v736
        %v738 = vand.u32 %v289, 4294901760
        %739 = vmatpush.msra.mxu0 %v738
        %v740 = vand.u32 %v288, 4294901760
        %741 = vmatpush.msra.mxu0 %v740
        %v742 = vand.u32 %v349, 4294901760
        %743 = vmatmul.f32.gmra.mxu0 %v742
        %v744 = vpop.f32.mrf.mxu0
        %v745 = vadd.f32 %v700, %v744
        %v746 = vand.u32 %v350, 4294901760
        %747 = vmatmul.f32.gmra.mxu0 %v746
        %v748 = vpop.f32.mrf.mxu0
        %v749 = vadd.f32 %v704, %v748
        %v750 = vand.u32 %v351, 4294901760
        %751 = vmatmul.f32.gmra.mxu0 %v750
        %v752 = vpop.f32.mrf.mxu0
        %v753 = vadd.f32 %v708, %v752
        %754 = vdwg.mxu0
        %v755 = vrot.slane %v307, 1
        %v756 = vrot.slane %v308, 1
        %v757 = vrot.slane %v309, 1
        %v758 = vsel %vm315, %v756, %v757
        %v759 = vsel %vm315, %v755, %v756
        %v760 = vsel %vm315, %v757, %v755
        %v761 = vadd.f32 %v307, %v759
        %v762 = vadd.f32 %v308, %v758
        %v763 = vadd.f32 %v309, %v760
        %v764 = vrot.slane %v307, 7
        %v765 = vrot.slane %v308, 7
        %v766 = vrot.slane %v309, 7
        %v767 = vsel %vm325, %v765, %v766
        %v768 = vsel %vm325, %v764, %v765
        %v769 = vsel %vm325, %v766, %v764
        %v770 = vadd.f32 %v761, %v769
        %v771 = vadd.f32 %v762, %v768
        %v772 = vadd.f32 %v763, %v767
        %v773 = vrot.slane %v770, 3
        %v774 = vrot.slane %v771, 3
        %v775 = vrot.slane %v772, 3
        %v776 = vsel %vm335, %v774, %v775
        %v777 = vsel %vm335, %v773, %v774
        %v778 = vsel %vm335, %v775, %v773
        %v779 = vadd.f32 %v770, %v777
        %v780 = vadd.f32 %v771, %v776
        %v781 = vadd.f32 %v772, %v778
        %v782 = vrot.slane %v770, 5
        %v783 = vrot.slane %v771, 5
        %v784 = vrot.slane %v772, 5
        %v785 = vsel %vm345, %v783, %v784
        %v786 = vsel %vm345, %v782, %v783
        %v787 = vsel %vm345, %v784, %v782
        %v788 = vadd.f32 %v779, %v787
        %v789 = vadd.f32 %v780, %v786
        %v790 = vadd.f32 %v781, %v785
        %v791 = vand.u32 %v303, 4294901760
        %792 = vmatpush.msra.mxu0 %v791
        %v793 = vand.u32 %v302, 4294901760
        %794 = vmatpush.msra.mxu0 %v793
        %v795 = vand.u32 %v301, 4294901760
        %796 = vmatpush.msra.mxu0 %v795
        %v797 = vand.u32 %v300, 4294901760
        %798 = vmatpush.msra.mxu0 %v797
        %v799 = vand.u32 %v299, 4294901760
        %800 = vmatpush.msra.mxu0 %v799
        %v801 = vand.u32 %v298, 4294901760
        %802 = vmatpush.msra.mxu0 %v801
        %v803 = vand.u32 %v297, 4294901760
        %804 = vmatpush.msra.mxu0 %v803
        %v805 = vand.u32 %v296, 4294901760
        %806 = vmatpush.msra.mxu0 %v805
        %v807 = vand.u32 %v295, 4294901760
        %808 = vmatpush.msra.mxu0 %v807
        %v809 = vand.u32 %v294, 4294901760
        %810 = vmatpush.msra.mxu0 %v809
        %v811 = vand.u32 %v293, 4294901760
        %812 = vmatpush.msra.mxu0 %v811
        %v813 = vand.u32 %v292, 4294901760
        %814 = vmatpush.msra.mxu0 %v813
        %v815 = vand.u32 %v291, 4294901760
        %816 = vmatpush.msra.mxu0 %v815
        %v817 = vand.u32 %v290, 4294901760
        %818 = vmatpush.msra.mxu0 %v817
        %v819 = vand.u32 %v289, 4294901760
        %820 = vmatpush.msra.mxu0 %v819
        %v821 = vand.u32 %v288, 4294901760
        %822 = vmatpush.msra.mxu0 %v821
        %v823 = vand.u32 %v788, 4294901760
        %v824 = vsub.f32 %v788, %v823
        %v825 = vand.u32 %v824, 4294901760
        %v826 = vsub.f32 %v824, %v825
        %v827 = vand.u32 %v826, 4294901760
        %828 = vmatmul.f32.gmra.mxu0 %v827
        %v829 = vpop.f32.mrf.mxu0
        %v830 = vadd.f32 0.0, %v829
        %v831 = vand.u32 %v789, 4294901760
        %v832 = vsub.f32 %v789, %v831
        %v833 = vand.u32 %v832, 4294901760
        %v834 = vsub.f32 %v832, %v833
        %v835 = vand.u32 %v834, 4294901760
        %836 = vmatmul.f32.gmra.mxu0 %v835
        %v837 = vpop.f32.mrf.mxu0
        %v838 = vadd.f32 0.0, %v837
        %v839 = vand.u32 %v790, 4294901760
        %v840 = vsub.f32 %v790, %v839
        %v841 = vand.u32 %v840, 4294901760
        %v842 = vsub.f32 %v840, %v841
        %v843 = vand.u32 %v842, 4294901760
        %844 = vmatmul.f32.gmra.mxu0 %v843
        %v845 = vpop.f32.mrf.mxu0
        %v846 = vadd.f32 0.0, %v845
        %847 = vdwg.mxu0
        %v848 = vand.u32 %v303, 4294901760
        %v849 = vsub.f32 %v303, %v848
        %v850 = vand.u32 %v849, 4294901760
        %v851 = vsub.f32 %v849, %v850
        %v852 = vand.u32 %v851, 4294901760
        %853 = vmatpush.msra.mxu0 %v852
        %v854 = vand.u32 %v302, 4294901760
        %v855 = vsub.f32 %v302, %v854
        %v856 = vand.u32 %v855, 4294901760
        %v857 = vsub.f32 %v855, %v856
        %v858 = vand.u32 %v857, 4294901760
        %859 = vmatpush.msra.mxu0 %v858
        %v860 = vand.u32 %v301, 4294901760
        %v861 = vsub.f32 %v301, %v860
        %v862 = vand.u32 %v861, 4294901760
        %v863 = vsub.f32 %v861, %v862
        %v864 = vand.u32 %v863, 4294901760
        %865 = vmatpush.msra.mxu0 %v864
        %v866 = vand.u32 %v300, 4294901760
        %v867 = vsub.f32 %v300, %v866
        %v868 = vand.u32 %v867, 4294901760
        %v869 = vsub.f32 %v867, %v868
        %v870 = vand.u32 %v869, 4294901760
        %871 = vmatpush.msra.mxu0 %v870
        %v872 = vand.u32 %v299, 4294901760
        %v873 = vsub.f32 %v299, %v872
        %v874 = vand.u32 %v873, 4294901760
        %v875 = vsub.f32 %v873, %v874
        %v876 = vand.u32 %v875, 4294901760
        %877 = vmatpush.msra.mxu0 %v876
        %v878 = vand.u32 %v298, 4294901760
        %v879 = vsub.f32 %v298, %v878
        %v880 = vand.u32 %v879, 4294901760
        %v881 = vsub.f32 %v879, %v880
        %v882 = vand.u32 %v881, 4294901760
        %883 = vmatpush.msra.mxu0 %v882
        %v884 = vand.u32 %v297, 4294901760
        %v885 = vsub.f32 %v297, %v884
        %v886 = vand.u32 %v885, 4294901760
        %v887 = vsub.f32 %v885, %v886
        %v888 = vand.u32 %v887, 4294901760
        %889 = vmatpush.msra.mxu0 %v888
        %v890 = vand.u32 %v296, 4294901760
        %v891 = vsub.f32 %v296, %v890
        %v892 = vand.u32 %v891, 4294901760
        %v893 = vsub.f32 %v891, %v892
        %v894 = vand.u32 %v893, 4294901760
        %895 = vmatpush.msra.mxu0 %v894
        %v896 = vand.u32 %v295, 4294901760
        %v897 = vsub.f32 %v295, %v896
        %v898 = vand.u32 %v897, 4294901760
        %v899 = vsub.f32 %v897, %v898
        %v900 = vand.u32 %v899, 4294901760
        %901 = vmatpush.msra.mxu0 %v900
        %v902 = vand.u32 %v294, 4294901760
        %v903 = vsub.f32 %v294, %v902
        %v904 = vand.u32 %v903, 4294901760
        %v905 = vsub.f32 %v903, %v904
        %v906 = vand.u32 %v905, 4294901760
        %907 = vmatpush.msra.mxu0 %v906
        %v908 = vand.u32 %v293, 4294901760
        %v909 = vsub.f32 %v293, %v908
        %v910 = vand.u32 %v909, 4294901760
        %v911 = vsub.f32 %v909, %v910
        %v912 = vand.u32 %v911, 4294901760
        %913 = vmatpush.msra.mxu0 %v912
        %v914 = vand.u32 %v292, 4294901760
        %v915 = vsub.f32 %v292, %v914
        %v916 = vand.u32 %v915, 4294901760
        %v917 = vsub.f32 %v915, %v916
        %v918 = vand.u32 %v917, 4294901760
        %919 = vmatpush.msra.mxu0 %v918
        %v920 = vand.u32 %v291, 4294901760
        %v921 = vsub.f32 %v291, %v920
        %v922 = vand.u32 %v921, 4294901760
        %v923 = vsub.f32 %v921, %v922
        %v924 = vand.u32 %v923, 4294901760
        %925 = vmatpush.msra.mxu0 %v924
        %v926 = vand.u32 %v290, 4294901760
        %v927 = vsub.f32 %v290, %v926
        %v928 = vand.u32 %v927, 4294901760
        %v929 = vsub.f32 %v927, %v928
        %v930 = vand.u32 %v929, 4294901760
        %931 = vmatpush.msra.mxu0 %v930
        %v932 = vand.u32 %v289, 4294901760
        %v933 = vsub.f32 %v289, %v932
        %v934 = vand.u32 %v933, 4294901760
        %v935 = vsub.f32 %v933, %v934
        %v936 = vand.u32 %v935, 4294901760
        %937 = vmatpush.msra.mxu0 %v936
        %v938 = vand.u32 %v288, 4294901760
        %v939 = vsub.f32 %v288, %v938
        %v940 = vand.u32 %v939, 4294901760
        %v941 = vsub.f32 %v939, %v940
        %v942 = vand.u32 %v941, 4294901760
        %943 = vmatpush.msra.mxu0 %v942
        %v944 = vand.u32 %v788, 4294901760
        %945 = vmatmul.f32.gmra.mxu0 %v944
        %v946 = vpop.f32.mrf.mxu0
        %v947 = vadd.f32 %v830, %v946
        %v948 = vand.u32 %v789, 4294901760
        %949 = vmatmul.f32.gmra.mxu0 %v948
        %v950 = vpop.f32.mrf.mxu0
        %v951 = vadd.f32 %v838, %v950
        %v952 = vand.u32 %v790, 4294901760
        %953 = vmatmul.f32.gmra.mxu0 %v952
        %v954 = vpop.f32.mrf.mxu0
        %v955 = vadd.f32 %v846, %v954
        %956 = vdwg.mxu0
        %v957 = vand.u32 %v303, 4294901760
        %v958 = vsub.f32 %v303, %v957
        %959 = vmatpush.msra.mxu0 %v958
        %v960 = vand.u32 %v302, 4294901760
        %v961 = vsub.f32 %v302, %v960
        %962 = vmatpush.msra.mxu0 %v961
        %v963 = vand.u32 %v301, 4294901760
        %v964 = vsub.f32 %v301, %v963
        %965 = vmatpush.msra.mxu0 %v964
        %v966 = vand.u32 %v300, 4294901760
        %v967 = vsub.f32 %v300, %v966
        %968 = vmatpush.msra.mxu0 %v967
        %v969 = vand.u32 %v299, 4294901760
        %v970 = vsub.f32 %v299, %v969
        %971 = vmatpush.msra.mxu0 %v970
        %v972 = vand.u32 %v298, 4294901760
        %v973 = vsub.f32 %v298, %v972
        %974 = vmatpush.msra.mxu0 %v973
        %v975 = vand.u32 %v297, 4294901760
        %v976 = vsub.f32 %v297, %v975
        %977 = vmatpush.msra.mxu0 %v976
        %v978 = vand.u32 %v296, 4294901760
        %v979 = vsub.f32 %v296, %v978
        %980 = vmatpush.msra.mxu0 %v979
        %v981 = vand.u32 %v295, 4294901760
        %v982 = vsub.f32 %v295, %v981
        %983 = vmatpush.msra.mxu0 %v982
        %v984 = vand.u32 %v294, 4294901760
        %v985 = vsub.f32 %v294, %v984
        %986 = vmatpush.msra.mxu0 %v985
        %v987 = vand.u32 %v293, 4294901760
        %v988 = vsub.f32 %v293, %v987
        %989 = vmatpush.msra.mxu0 %v988
        %v990 = vand.u32 %v292, 4294901760
        %v991 = vsub.f32 %v292, %v990
        %992 = vmatpush.msra.mxu0 %v991
        %v993 = vand.u32 %v291, 4294901760
        %v994 = vsub.f32 %v291, %v993
        %995 = vmatpush.msra.mxu0 %v994
        %v996 = vand.u32 %v290, 4294901760
        %v997 = vsub.f32 %v290, %v996
        %998 = vmatpush.msra.mxu0 %v997
        %v999 = vand.u32 %v289, 4294901760
        %v1000 = vsub.f32 %v289, %v999
        %1001 = vmatpush.msra.mxu0 %v1000
        %v1002 = vand.u32 %v288, 4294901760
        %v1003 = vsub.f32 %v288, %v1002
        %1004 = vmatpush.msra.mxu0 %v1003
        %v1005 = vand.u32 %v788, 4294901760
        %v1006 = vsub.f32 %v788, %v1005
        %1007 = vmatmul.f32.gmra.mxu0 %v1006
        %v1008 = vpop.f32.mrf.mxu0
        %v1009 = vadd.f32 %v947, %v1008
        %v1010 = vand.u32 %v789, 4294901760
        %v1011 = vsub.f32 %v789, %v1010
        %1012 = vmatmul.f32.gmra.mxu0 %v1011
        %v1013 = vpop.f32.mrf.mxu0
        %v1014 = vadd.f32 %v951, %v1013
        %v1015 = vand.u32 %v790, 4294901760
        %v1016 = vsub.f32 %v790, %v1015
        %1017 = vmatmul.f32.gmra.mxu0 %v1016
        %v1018 = vpop.f32.mrf.mxu0
        %v1019 = vadd.f32 %v955, %v1018
        %1020 = vdwg.mxu0
        %v1021 = vand.u32 %v303, 4294901760
        %1022 = vmatpush.msra.mxu0 %v1021
        %v1023 = vand.u32 %v302, 4294901760
        %1024 = vmatpush.msra.mxu0 %v1023
        %v1025 = vand.u32 %v301, 4294901760
        %1026 = vmatpush.msra.mxu0 %v1025
        %v1027 = vand.u32 %v300, 4294901760
        %1028 = vmatpush.msra.mxu0 %v1027
        %v1029 = vand.u32 %v299, 4294901760
        %1030 = vmatpush.msra.mxu0 %v1029
        %v1031 = vand.u32 %v298, 4294901760
        %1032 = vmatpush.msra.mxu0 %v1031
        %v1033 = vand.u32 %v297, 4294901760
        %1034 = vmatpush.msra.mxu0 %v1033
        %v1035 = vand.u32 %v296, 4294901760
        %1036 = vmatpush.msra.mxu0 %v1035
        %v1037 = vand.u32 %v295, 4294901760
        %1038 = vmatpush.msra.mxu0 %v1037
        %v1039 = vand.u32 %v294, 4294901760
        %1040 = vmatpush.msra.mxu0 %v1039
        %v1041 = vand.u32 %v293, 4294901760
        %1042 = vmatpush.msra.mxu0 %v1041
        %v1043 = vand.u32 %v292, 4294901760
        %1044 = vmatpush.msra.mxu0 %v1043
        %v1045 = vand.u32 %v291, 4294901760
        %1046 = vmatpush.msra.mxu0 %v1045
        %v1047 = vand.u32 %v290, 4294901760
        %1048 = vmatpush.msra.mxu0 %v1047
        %v1049 = vand.u32 %v289, 4294901760
        %1050 = vmatpush.msra.mxu0 %v1049
        %v1051 = vand.u32 %v288, 4294901760
        %1052 = vmatpush.msra.mxu0 %v1051
        %v1053 = vand.u32 %v788, 4294901760
        %v1054 = vsub.f32 %v788, %v1053
        %v1055 = vand.u32 %v1054, 4294901760
        %1056 = vmatmul.f32.gmra.mxu0 %v1055
        %v1057 = vpop.f32.mrf.mxu0
        %v1058 = vadd.f32 %v1009, %v1057
        %v1059 = vand.u32 %v789, 4294901760
        %v1060 = vsub.f32 %v789, %v1059
        %v1061 = vand.u32 %v1060, 4294901760
        %1062 = vmatmul.f32.gmra.mxu0 %v1061
        %v1063 = vpop.f32.mrf.mxu0
        %v1064 = vadd.f32 %v1014, %v1063
        %v1065 = vand.u32 %v790, 4294901760
        %v1066 = vsub.f32 %v790, %v1065
        %v1067 = vand.u32 %v1066, 4294901760
        %1068 = vmatmul.f32.gmra.mxu0 %v1067
        %v1069 = vpop.f32.mrf.mxu0
        %v1070 = vadd.f32 %v1019, %v1069
        %1071 = vdwg.mxu0
        %v1072 = vand.u32 %v303, 4294901760
        %v1073 = vsub.f32 %v303, %v1072
        %v1074 = vand.u32 %v1073, 4294901760
        %1075 = vmatpush.msra.mxu0 %v1074
        %v1076 = vand.u32 %v302, 4294901760
        %v1077 = vsub.f32 %v302, %v1076
        %v1078 = vand.u32 %v1077, 4294901760
        %1079 = vmatpush.msra.mxu0 %v1078
        %v1080 = vand.u32 %v301, 4294901760
        %v1081 = vsub.f32 %v301, %v1080
        %v1082 = vand.u32 %v1081, 4294901760
        %1083 = vmatpush.msra.mxu0 %v1082
        %v1084 = vand.u32 %v300, 4294901760
        %v1085 = vsub.f32 %v300, %v1084
        %v1086 = vand.u32 %v1085, 4294901760
        %1087 = vmatpush.msra.mxu0 %v1086
        %v1088 = vand.u32 %v299, 4294901760
        %v1089 = vsub.f32 %v299, %v1088
        %v1090 = vand.u32 %v1089, 4294901760
        %1091 = vmatpush.msra.mxu0 %v1090
        %v1092 = vand.u32 %v298, 4294901760
        %v1093 = vsub.f32 %v298, %v1092
        %v1094 = vand.u32 %v1093, 4294901760
        %1095 = vmatpush.msra.mxu0 %v1094
        %v1096 = vand.u32 %v297, 4294901760
        %v1097 = vsub.f32 %v297, %v1096
        %v1098 = vand.u32 %v1097, 4294901760
        %1099 = vmatpush.msra.mxu0 %v1098
        %v1100 = vand.u32 %v296, 4294901760
        %v1101 = vsub.f32 %v296, %v1100
        %v1102 = vand.u32 %v1101, 4294901760
        %1103 = vmatpush.msra.mxu0 %v1102
        %v1104 = vand.u32 %v295, 4294901760
        %v1105 = vsub.f32 %v295, %v1104
        %v1106 = vand.u32 %v1105, 4294901760
        %1107 = vmatpush.msra.mxu0 %v1106
        %v1108 = vand.u32 %v294, 4294901760
        %v1109 = vsub.f32 %v294, %v1108
        %v1110 = vand.u32 %v1109, 4294901760
        %1111 = vmatpush.msra.mxu0 %v1110
        %v1112 = vand.u32 %v293, 4294901760
        %v1113 = vsub.f32 %v293, %v1112
        %v1114 = vand.u32 %v1113, 4294901760
        %1115 = vmatpush.msra.mxu0 %v1114
        %v1116 = vand.u32 %v292, 4294901760
        %v1117 = vsub.f32 %v292, %v1116
        %v1118 = vand.u32 %v1117, 4294901760
        %1119 = vmatpush.msra.mxu0 %v1118
        %v1120 = vand.u32 %v291, 4294901760
        %v1121 = vsub.f32 %v291, %v1120
        %v1122 = vand.u32 %v1121, 4294901760
        %1123 = vmatpush.msra.mxu0 %v1122
        %v1124 = vand.u32 %v290, 4294901760
        %v1125 = vsub.f32 %v290, %v1124
        %v1126 = vand.u32 %v1125, 4294901760
        %1127 = vmatpush.msra.mxu0 %v1126
        %v1128 = vand.u32 %v289, 4294901760
        %v1129 = vsub.f32 %v289, %v1128
        %v1130 = vand.u32 %v1129, 4294901760
        %1131 = vmatpush.msra.mxu0 %v1130
        %v1132 = vand.u32 %v288, 4294901760
        %v1133 = vsub.f32 %v288, %v1132
        %v1134 = vand.u32 %v1133, 4294901760
        %1135 = vmatpush.msra.mxu0 %v1134
        %v1136 = vand.u32 %v788, 4294901760
        %1137 = vmatmul.f32.gmra.mxu0 %v1136
        %v1138 = vpop.f32.mrf.mxu0
        %v1139 = vadd.f32 %v1058, %v1138
        %v1140 = vand.u32 %v789, 4294901760
        %1141 = vmatmul.f32.gmra.mxu0 %v1140
        %v1142 = vpop.f32.mrf.mxu0
        %v1143 = vadd.f32 %v1064, %v1142
        %v1144 = vand.u32 %v790, 4294901760
        %1145 = vmatmul.f32.gmra.mxu0 %v1144
        %v1146 = vpop.f32.mrf.mxu0
        %v1147 = vadd.f32 %v1070, %v1146
        %1148 = vdwg.mxu0
        %v1149 = vand.u32 %v303, 4294901760
        %1150 = vmatpush.msra.mxu0 %v1149
        %v1151 = vand.u32 %v302, 4294901760
        %1152 = vmatpush.msra.mxu0 %v1151
        %v1153 = vand.u32 %v301, 4294901760
        %1154 = vmatpush.msra.mxu0 %v1153
        %v1155 = vand.u32 %v300, 4294901760
        %1156 = vmatpush.msra.mxu0 %v1155
        %v1157 = vand.u32 %v299, 4294901760
        %1158 = vmatpush.msra.mxu0 %v1157
        %v1159 = vand.u32 %v298, 4294901760
        %1160 = vmatpush.msra.mxu0 %v1159
        %v1161 = vand.u32 %v297, 4294901760
        %1162 = vmatpush.msra.mxu0 %v1161
        %v1163 = vand.u32 %v296, 4294901760
        %1164 = vmatpush.msra.mxu0 %v1163
        %v1165 = vand.u32 %v295, 4294901760
        %1166 = vmatpush.msra.mxu0 %v1165
        %v1167 = vand.u32 %v294, 4294901760
        %1168 = vmatpush.msra.mxu0 %v1167
        %v1169 = vand.u32 %v293, 4294901760
        %1170 = vmatpush.msra.mxu0 %v1169
        %v1171 = vand.u32 %v292, 4294901760
        %1172 = vmatpush.msra.mxu0 %v1171
        %v1173 = vand.u32 %v291, 4294901760
        %1174 = vmatpush.msra.mxu0 %v1173
        %v1175 = vand.u32 %v290, 4294901760
        %1176 = vmatpush.msra.mxu0 %v1175
        %v1177 = vand.u32 %v289, 4294901760
        %1178 = vmatpush.msra.mxu0 %v1177
        %v1179 = vand.u32 %v288, 4294901760
        %1180 = vmatpush.msra.mxu0 %v1179
        %v1181 = vand.u32 %v788, 4294901760
        %1182 = vmatmul.f32.gmra.mxu0 %v1181
        %v1183 = vpop.f32.mrf.mxu0
        %v1184 = vadd.f32 %v1139, %v1183
        %v1185 = vand.u32 %v789, 4294901760
        %1186 = vmatmul.f32.gmra.mxu0 %v1185
        %v1187 = vpop.f32.mrf.mxu0
        %v1188 = vadd.f32 %v1143, %v1187
        %v1189 = vand.u32 %v790, 4294901760
        %1190 = vmatmul.f32.gmra.mxu0 %v1189
        %v1191 = vpop.f32.mrf.mxu0
        %v1192 = vadd.f32 %v1147, %v1191
        %1193 = vdwg.mxu0
        %v1194 = vmul.f32 %v304, %v304
        %v1195 = vmul.f32 %v305, %v305
        %v1196 = vmul.f32 %v306, %v306
        %v1197 = vrot.slane %v1194, 1
        %v1198 = vrot.slane %v1195, 1
        %v1199 = vrot.slane %v1196, 1
        %v1200 = vsel %vm315, %v1198, %v1199
        %v1201 = vsel %vm315, %v1197, %v1198
        %v1202 = vsel %vm315, %v1199, %v1197
        %v1203 = vadd.f32 %v1194, %v1201
        %v1204 = vadd.f32 %v1195, %v1200
        %v1205 = vadd.f32 %v1196, %v1202
        %v1206 = vrot.slane %v1194, 7
        %v1207 = vrot.slane %v1195, 7
        %v1208 = vrot.slane %v1196, 7
        %v1209 = vsel %vm325, %v1207, %v1208
        %v1210 = vsel %vm325, %v1206, %v1207
        %v1211 = vsel %vm325, %v1208, %v1206
        %v1212 = vadd.f32 %v1203, %v1211
        %v1213 = vadd.f32 %v1204, %v1210
        %v1214 = vadd.f32 %v1205, %v1209
        %v1215 = vrot.slane %v1212, 3
        %v1216 = vrot.slane %v1213, 3
        %v1217 = vrot.slane %v1214, 3
        %v1218 = vsel %vm335, %v1216, %v1217
        %v1219 = vsel %vm335, %v1215, %v1216
        %v1220 = vsel %vm335, %v1217, %v1215
        %v1221 = vadd.f32 %v1212, %v1219
        %v1222 = vadd.f32 %v1213, %v1218
        %v1223 = vadd.f32 %v1214, %v1220
        %v1224 = vrot.slane %v1212, 5
        %v1225 = vrot.slane %v1213, 5
        %v1226 = vrot.slane %v1214, 5
        %v1227 = vsel %vm345, %v1225, %v1226
        %v1228 = vsel %vm345, %v1224, %v1225
        %v1229 = vsel %vm345, %v1226, %v1224
        %v1230 = vadd.f32 %v1221, %v1229
        %v1231 = vadd.f32 %v1222, %v1228
        %v1232 = vadd.f32 %v1223, %v1227
        %v1233 = vand.u32 %v303, 4294901760
        %1234 = vmatpush.msra.mxu0 %v1233
        %v1235 = vand.u32 %v302, 4294901760
        %1236 = vmatpush.msra.mxu0 %v1235
        %v1237 = vand.u32 %v301, 4294901760
        %1238 = vmatpush.msra.mxu0 %v1237
        %v1239 = vand.u32 %v300, 4294901760
        %1240 = vmatpush.msra.mxu0 %v1239
        %v1241 = vand.u32 %v299, 4294901760
        %1242 = vmatpush.msra.mxu0 %v1241
        %v1243 = vand.u32 %v298, 4294901760
        %1244 = vmatpush.msra.mxu0 %v1243
        %v1245 = vand.u32 %v297, 4294901760
        %1246 = vmatpush.msra.mxu0 %v1245
        %v1247 = vand.u32 %v296, 4294901760
        %1248 = vmatpush.msra.mxu0 %v1247
        %v1249 = vand.u32 %v295, 4294901760
        %1250 = vmatpush.msra.mxu0 %v1249
        %v1251 = vand.u32 %v294, 4294901760
        %1252 = vmatpush.msra.mxu0 %v1251
        %v1253 = vand.u32 %v293, 4294901760
        %1254 = vmatpush.msra.mxu0 %v1253
        %v1255 = vand.u32 %v292, 4294901760
        %1256 = vmatpush.msra.mxu0 %v1255
        %v1257 = vand.u32 %v291, 4294901760
        %1258 = vmatpush.msra.mxu0 %v1257
        %v1259 = vand.u32 %v290, 4294901760
        %1260 = vmatpush.msra.mxu0 %v1259
        %v1261 = vand.u32 %v289, 4294901760
        %1262 = vmatpush.msra.mxu0 %v1261
        %v1263 = vand.u32 %v288, 4294901760
        %1264 = vmatpush.msra.mxu0 %v1263
        %v1265 = vand.u32 %v1230, 4294901760
        %v1266 = vsub.f32 %v1230, %v1265
        %v1267 = vand.u32 %v1266, 4294901760
        %v1268 = vsub.f32 %v1266, %v1267
        %v1269 = vand.u32 %v1268, 4294901760
        %1270 = vmatmul.f32.gmra.mxu0 %v1269
        %v1271 = vpop.f32.mrf.mxu0
        %v1272 = vadd.f32 0.0, %v1271
        %v1273 = vand.u32 %v1231, 4294901760
        %v1274 = vsub.f32 %v1231, %v1273
        %v1275 = vand.u32 %v1274, 4294901760
        %v1276 = vsub.f32 %v1274, %v1275
        %v1277 = vand.u32 %v1276, 4294901760
        %1278 = vmatmul.f32.gmra.mxu0 %v1277
        %v1279 = vpop.f32.mrf.mxu0
        %v1280 = vadd.f32 0.0, %v1279
        %v1281 = vand.u32 %v1232, 4294901760
        %v1282 = vsub.f32 %v1232, %v1281
        %v1283 = vand.u32 %v1282, 4294901760
        %v1284 = vsub.f32 %v1282, %v1283
        %v1285 = vand.u32 %v1284, 4294901760
        %1286 = vmatmul.f32.gmra.mxu0 %v1285
        %v1287 = vpop.f32.mrf.mxu0
        %v1288 = vadd.f32 0.0, %v1287
        %1289 = vdwg.mxu0
        %v1290 = vand.u32 %v303, 4294901760
        %v1291 = vsub.f32 %v303, %v1290
        %v1292 = vand.u32 %v1291, 4294901760
        %v1293 = vsub.f32 %v1291, %v1292
        %v1294 = vand.u32 %v1293, 4294901760
        %1295 = vmatpush.msra.mxu0 %v1294
        %v1296 = vand.u32 %v302, 4294901760
        %v1297 = vsub.f32 %v302, %v1296
        %v1298 = vand.u32 %v1297, 4294901760
        %v1299 = vsub.f32 %v1297, %v1298
        %v1300 = vand.u32 %v1299, 4294901760
        %1301 = vmatpush.msra.mxu0 %v1300
        %v1302 = vand.u32 %v301, 4294901760
        %v1303 = vsub.f32 %v301, %v1302
        %v1304 = vand.u32 %v1303, 4294901760
        %v1305 = vsub.f32 %v1303, %v1304
        %v1306 = vand.u32 %v1305, 4294901760
        %1307 = vmatpush.msra.mxu0 %v1306
        %v1308 = vand.u32 %v300, 4294901760
        %v1309 = vsub.f32 %v300, %v1308
        %v1310 = vand.u32 %v1309, 4294901760
        %v1311 = vsub.f32 %v1309, %v1310
        %v1312 = vand.u32 %v1311, 4294901760
        %1313 = vmatpush.msra.mxu0 %v1312
        %v1314 = vand.u32 %v299, 4294901760
        %v1315 = vsub.f32 %v299, %v1314
        %v1316 = vand.u32 %v1315, 4294901760
        %v1317 = vsub.f32 %v1315, %v1316
        %v1318 = vand.u32 %v1317, 4294901760
        %1319 = vmatpush.msra.mxu0 %v1318
        %v1320 = vand.u32 %v298, 4294901760
        %v1321 = vsub.f32 %v298, %v1320
        %v1322 = vand.u32 %v1321, 4294901760
        %v1323 = vsub.f32 %v1321, %v1322
        %v1324 = vand.u32 %v1323, 4294901760
        %1325 = vmatpush.msra.mxu0 %v1324
        %v1326 = vand.u32 %v297, 4294901760
        %v1327 = vsub.f32 %v297, %v1326
        %v1328 = vand.u32 %v1327, 4294901760
        %v1329 = vsub.f32 %v1327, %v1328
        %v1330 = vand.u32 %v1329, 4294901760
        %1331 = vmatpush.msra.mxu0 %v1330
        %v1332 = vand.u32 %v296, 4294901760
        %v1333 = vsub.f32 %v296, %v1332
        %v1334 = vand.u32 %v1333, 4294901760
        %v1335 = vsub.f32 %v1333, %v1334
        %v1336 = vand.u32 %v1335, 4294901760
        %1337 = vmatpush.msra.mxu0 %v1336
        %v1338 = vand.u32 %v295, 4294901760
        %v1339 = vsub.f32 %v295, %v1338
        %v1340 = vand.u32 %v1339, 4294901760
        %v1341 = vsub.f32 %v1339, %v1340
        %v1342 = vand.u32 %v1341, 4294901760
        %1343 = vmatpush.msra.mxu0 %v1342
        %v1344 = vand.u32 %v294, 4294901760
        %v1345 = vsub.f32 %v294, %v1344
        %v1346 = vand.u32 %v1345, 4294901760
        %v1347 = vsub.f32 %v1345, %v1346
        %v1348 = vand.u32 %v1347, 4294901760
        %1349 = vmatpush.msra.mxu0 %v1348
        %v1350 = vand.u32 %v293, 4294901760
        %v1351 = vsub.f32 %v293, %v1350
        %v1352 = vand.u32 %v1351, 4294901760
        %v1353 = vsub.f32 %v1351, %v1352
        %v1354 = vand.u32 %v1353, 4294901760
        %1355 = vmatpush.msra.mxu0 %v1354
        %v1356 = vand.u32 %v292, 4294901760
        %v1357 = vsub.f32 %v292, %v1356
        %v1358 = vand.u32 %v1357, 4294901760
        %v1359 = vsub.f32 %v1357, %v1358
        %v1360 = vand.u32 %v1359, 4294901760
        %1361 = vmatpush.msra.mxu0 %v1360
        %v1362 = vand.u32 %v291, 4294901760
        %v1363 = vsub.f32 %v291, %v1362
        %v1364 = vand.u32 %v1363, 4294901760
        %v1365 = vsub.f32 %v1363, %v1364
        %v1366 = vand.u32 %v1365, 4294901760
        %1367 = vmatpush.msra.mxu0 %v1366
        %v1368 = vand.u32 %v290, 4294901760
        %v1369 = vsub.f32 %v290, %v1368
        %v1370 = vand.u32 %v1369, 4294901760
        %v1371 = vsub.f32 %v1369, %v1370
        %v1372 = vand.u32 %v1371, 4294901760
        %1373 = vmatpush.msra.mxu0 %v1372
        %v1374 = vand.u32 %v289, 4294901760
        %v1375 = vsub.f32 %v289, %v1374
        %v1376 = vand.u32 %v1375, 4294901760
        %v1377 = vsub.f32 %v1375, %v1376
        %v1378 = vand.u32 %v1377, 4294901760
        %1379 = vmatpush.msra.mxu0 %v1378
        %v1380 = vand.u32 %v288, 4294901760
        %v1381 = vsub.f32 %v288, %v1380
        %v1382 = vand.u32 %v1381, 4294901760
        %v1383 = vsub.f32 %v1381, %v1382
        %v1384 = vand.u32 %v1383, 4294901760
        %1385 = vmatpush.msra.mxu0 %v1384
        %v1386 = vand.u32 %v1230, 4294901760
        %1387 = vmatmul.f32.gmra.mxu0 %v1386
        %v1388 = vpop.f32.mrf.mxu0
        %v1389 = vadd.f32 %v1272, %v1388
        %v1390 = vand.u32 %v1231, 4294901760
        %1391 = vmatmul.f32.gmra.mxu0 %v1390
        %v1392 = vpop.f32.mrf.mxu0
        %v1393 = vadd.f32 %v1280, %v1392
        %v1394 = vand.u32 %v1232, 4294901760
        %1395 = vmatmul.f32.gmra.mxu0 %v1394
        %v1396 = vpop.f32.mrf.mxu0
        %v1397 = vadd.f32 %v1288, %v1396
        %1398 = vdwg.mxu0
        %v1399 = vand.u32 %v303, 4294901760
        %v1400 = vsub.f32 %v303, %v1399
        %1401 = vmatpush.msra.mxu0 %v1400
        %v1402 = vand.u32 %v302, 4294901760
        %v1403 = vsub.f32 %v302, %v1402
        %1404 = vmatpush.msra.mxu0 %v1403
        %v1405 = vand.u32 %v301, 4294901760
        %v1406 = vsub.f32 %v301, %v1405
        %1407 = vmatpush.msra.mxu0 %v1406
        %v1408 = vand.u32 %v300, 4294901760
        %v1409 = vsub.f32 %v300, %v1408
        %1410 = vmatpush.msra.mxu0 %v1409
        %v1411 = vand.u32 %v299, 4294901760
        %v1412 = vsub.f32 %v299, %v1411
        %1413 = vmatpush.msra.mxu0 %v1412
        %v1414 = vand.u32 %v298, 4294901760
        %v1415 = vsub.f32 %v298, %v1414
        %1416 = vmatpush.msra.mxu0 %v1415
        %v1417 = vand.u32 %v297, 4294901760
        %v1418 = vsub.f32 %v297, %v1417
        %1419 = vmatpush.msra.mxu0 %v1418
        %v1420 = vand.u32 %v296, 4294901760
        %v1421 = vsub.f32 %v296, %v1420
        %1422 = vmatpush.msra.mxu0 %v1421
        %v1423 = vand.u32 %v295, 4294901760
        %v1424 = vsub.f32 %v295, %v1423
        %1425 = vmatpush.msra.mxu0 %v1424
        %v1426 = vand.u32 %v294, 4294901760
        %v1427 = vsub.f32 %v294, %v1426
        %1428 = vmatpush.msra.mxu0 %v1427
        %v1429 = vand.u32 %v293, 4294901760
        %v1430 = vsub.f32 %v293, %v1429
        %1431 = vmatpush.msra.mxu0 %v1430
        %v1432 = vand.u32 %v292, 4294901760
        %v1433 = vsub.f32 %v292, %v1432
        %1434 = vmatpush.msra.mxu0 %v1433
        %v1435 = vand.u32 %v291, 4294901760
        %v1436 = vsub.f32 %v291, %v1435
        %1437 = vmatpush.msra.mxu0 %v1436
        %v1438 = vand.u32 %v290, 4294901760
        %v1439 = vsub.f32 %v290, %v1438
        %1440 = vmatpush.msra.mxu0 %v1439
        %v1441 = vand.u32 %v289, 4294901760
        %v1442 = vsub.f32 %v289, %v1441
        %1443 = vmatpush.msra.mxu0 %v1442
        %v1444 = vand.u32 %v288, 4294901760
        %v1445 = vsub.f32 %v288, %v1444
        %1446 = vmatpush.msra.mxu0 %v1445
        %v1447 = vand.u32 %v1230, 4294901760
        %v1448 = vsub.f32 %v1230, %v1447
        %1449 = vmatmul.f32.gmra.mxu0 %v1448
        %v1450 = vpop.f32.mrf.mxu0
        %v1451 = vadd.f32 %v1389, %v1450
        %v1452 = vand.u32 %v1231, 4294901760
        %v1453 = vsub.f32 %v1231, %v1452
        %1454 = vmatmul.f32.gmra.mxu0 %v1453
        %v1455 = vpop.f32.mrf.mxu0
        %v1456 = vadd.f32 %v1393, %v1455
        %v1457 = vand.u32 %v1232, 4294901760
        %v1458 = vsub.f32 %v1232, %v1457
        %1459 = vmatmul.f32.gmra.mxu0 %v1458
        %v1460 = vpop.f32.mrf.mxu0
        %v1461 = vadd.f32 %v1397, %v1460
        %1462 = vdwg.mxu0
        %v1463 = vand.u32 %v303, 4294901760
        %1464 = vmatpush.msra.mxu0 %v1463
        %v1465 = vand.u32 %v302, 4294901760
        %1466 = vmatpush.msra.mxu0 %v1465
        %v1467 = vand.u32 %v301, 4294901760
        %1468 = vmatpush.msra.mxu0 %v1467
        %v1469 = vand.u32 %v300, 4294901760
        %1470 = vmatpush.msra.mxu0 %v1469
        %v1471 = vand.u32 %v299, 4294901760
        %1472 = vmatpush.msra.mxu0 %v1471
        %v1473 = vand.u32 %v298, 4294901760
        %1474 = vmatpush.msra.mxu0 %v1473
        %v1475 = vand.u32 %v297, 4294901760
        %1476 = vmatpush.msra.mxu0 %v1475
        %v1477 = vand.u32 %v296, 4294901760
        %1478 = vmatpush.msra.mxu0 %v1477
        %v1479 = vand.u32 %v295, 4294901760
        %1480 = vmatpush.msra.mxu0 %v1479
        %v1481 = vand.u32 %v294, 4294901760
        %1482 = vmatpush.msra.mxu0 %v1481
        %v1483 = vand.u32 %v293, 4294901760
        %1484 = vmatpush.msra.mxu0 %v1483
        %v1485 = vand.u32 %v292, 4294901760
        %1486 = vmatpush.msra.mxu0 %v1485
        %v1487 = vand.u32 %v291, 4294901760
        %1488 = vmatpush.msra.mxu0 %v1487
        %v1489 = vand.u32 %v290, 4294901760
        %1490 = vmatpush.msra.mxu0 %v1489
        %v1491 = vand.u32 %v289, 4294901760
        %1492 = vmatpush.msra.mxu0 %v1491
        %v1493 = vand.u32 %v288, 4294901760
        %1494 = vmatpush.msra.mxu0 %v1493
        %v1495 = vand.u32 %v1230, 4294901760
        %v1496 = vsub.f32 %v1230, %v1495
        %v1497 = vand.u32 %v1496, 4294901760
        %1498 = vmatmul.f32.gmra.mxu0 %v1497
        %v1499 = vpop.f32.mrf.mxu0
        %v1500 = vadd.f32 %v1451, %v1499
        %v1501 = vand.u32 %v1231, 4294901760
        %v1502 = vsub.f32 %v1231, %v1501
        %v1503 = vand.u32 %v1502, 4294901760
        %1504 = vmatmul.f32.gmra.mxu0 %v1503
        %v1505 = vpop.f32.mrf.mxu0
        %v1506 = vadd.f32 %v1456, %v1505
        %v1507 = vand.u32 %v1232, 4294901760
        %v1508 = vsub.f32 %v1232, %v1507
        %v1509 = vand.u32 %v1508, 4294901760
        %1510 = vmatmul.f32.gmra.mxu0 %v1509
        %v1511 = vpop.f32.mrf.mxu0
        %v1512 = vadd.f32 %v1461, %v1511
        %1513 = vdwg.mxu0
        %v1514 = vand.u32 %v303, 4294901760
        %v1515 = vsub.f32 %v303, %v1514
        %v1516 = vand.u32 %v1515, 4294901760
        %1517 = vmatpush.msra.mxu0 %v1516
        %v1518 = vand.u32 %v302, 4294901760
        %v1519 = vsub.f32 %v302, %v1518
        %v1520 = vand.u32 %v1519, 4294901760
        %1521 = vmatpush.msra.mxu0 %v1520
        %v1522 = vand.u32 %v301, 4294901760
        %v1523 = vsub.f32 %v301, %v1522
        %v1524 = vand.u32 %v1523, 4294901760
        %1525 = vmatpush.msra.mxu0 %v1524
        %v1526 = vand.u32 %v300, 4294901760
        %v1527 = vsub.f32 %v300, %v1526
        %v1528 = vand.u32 %v1527, 4294901760
        %1529 = vmatpush.msra.mxu0 %v1528
        %v1530 = vand.u32 %v299, 4294901760
        %v1531 = vsub.f32 %v299, %v1530
        %v1532 = vand.u32 %v1531, 4294901760
        %1533 = vmatpush.msra.mxu0 %v1532
        %v1534 = vand.u32 %v298, 4294901760
        %v1535 = vsub.f32 %v298, %v1534
        %v1536 = vand.u32 %v1535, 4294901760
        %1537 = vmatpush.msra.mxu0 %v1536
        %v1538 = vand.u32 %v297, 4294901760
        %v1539 = vsub.f32 %v297, %v1538
        %v1540 = vand.u32 %v1539, 4294901760
        %1541 = vmatpush.msra.mxu0 %v1540
        %v1542 = vand.u32 %v296, 4294901760
        %v1543 = vsub.f32 %v296, %v1542
        %v1544 = vand.u32 %v1543, 4294901760
        %1545 = vmatpush.msra.mxu0 %v1544
        %v1546 = vand.u32 %v295, 4294901760
        %v1547 = vsub.f32 %v295, %v1546
        %v1548 = vand.u32 %v1547, 4294901760
        %1549 = vmatpush.msra.mxu0 %v1548
        %v1550 = vand.u32 %v294, 4294901760
        %v1551 = vsub.f32 %v294, %v1550
        %v1552 = vand.u32 %v1551, 4294901760
        %1553 = vmatpush.msra.mxu0 %v1552
        %v1554 = vand.u32 %v293, 4294901760
        %v1555 = vsub.f32 %v293, %v1554
        %v1556 = vand.u32 %v1555, 4294901760
        %1557 = vmatpush.msra.mxu0 %v1556
        %v1558 = vand.u32 %v292, 4294901760
        %v1559 = vsub.f32 %v292, %v1558
        %v1560 = vand.u32 %v1559, 4294901760
        %1561 = vmatpush.msra.mxu0 %v1560
        %v1562 = vand.u32 %v291, 4294901760
        %v1563 = vsub.f32 %v291, %v1562
        %v1564 = vand.u32 %v1563, 4294901760
        %1565 = vmatpush.msra.mxu0 %v1564
        %v1566 = vand.u32 %v290, 4294901760
        %v1567 = vsub.f32 %v290, %v1566
        %v1568 = vand.u32 %v1567, 4294901760
        %1569 = vmatpush.msra.mxu0 %v1568
        %v1570 = vand.u32 %v289, 4294901760
        %v1571 = vsub.f32 %v289, %v1570
        %v1572 = vand.u32 %v1571, 4294901760
        %1573 = vmatpush.msra.mxu0 %v1572
        %v1574 = vand.u32 %v288, 4294901760
        %v1575 = vsub.f32 %v288, %v1574
        %v1576 = vand.u32 %v1575, 4294901760
        %1577 = vmatpush.msra.mxu0 %v1576
        %v1578 = vand.u32 %v1230, 4294901760
        %1579 = vmatmul.f32.gmra.mxu0 %v1578
        %v1580 = vpop.f32.mrf.mxu0
        %v1581 = vadd.f32 %v1500, %v1580
        %v1582 = vand.u32 %v1231, 4294901760
        %1583 = vmatmul.f32.gmra.mxu0 %v1582
        %v1584 = vpop.f32.mrf.mxu0
        %v1585 = vadd.f32 %v1506, %v1584
        %v1586 = vand.u32 %v1232, 4294901760
        %1587 = vmatmul.f32.gmra.mxu0 %v1586
        %v1588 = vpop.f32.mrf.mxu0
        %v1589 = vadd.f32 %v1512, %v1588
        %1590 = vdwg.mxu0
        %v1591 = vand.u32 %v303, 4294901760
        %1592 = vmatpush.msra.mxu0 %v1591
        %v1593 = vand.u32 %v302, 4294901760
        %1594 = vmatpush.msra.mxu0 %v1593
        %v1595 = vand.u32 %v301, 4294901760
        %1596 = vmatpush.msra.mxu0 %v1595
        %v1597 = vand.u32 %v300, 4294901760
        %1598 = vmatpush.msra.mxu0 %v1597
        %v1599 = vand.u32 %v299, 4294901760
        %1600 = vmatpush.msra.mxu0 %v1599
        %v1601 = vand.u32 %v298, 4294901760
        %1602 = vmatpush.msra.mxu0 %v1601
        %v1603 = vand.u32 %v297, 4294901760
        %1604 = vmatpush.msra.mxu0 %v1603
        %v1605 = vand.u32 %v296, 4294901760
        %1606 = vmatpush.msra.mxu0 %v1605
        %v1607 = vand.u32 %v295, 4294901760
        %1608 = vmatpush.msra.mxu0 %v1607
        %v1609 = vand.u32 %v294, 4294901760
        %1610 = vmatpush.msra.mxu0 %v1609
        %v1611 = vand.u32 %v293, 4294901760
        %1612 = vmatpush.msra.mxu0 %v1611
        %v1613 = vand.u32 %v292, 4294901760
        %1614 = vmatpush.msra.mxu0 %v1613
        %v1615 = vand.u32 %v291, 4294901760
        %1616 = vmatpush.msra.mxu0 %v1615
        %v1617 = vand.u32 %v290, 4294901760
        %1618 = vmatpush.msra.mxu0 %v1617
        %v1619 = vand.u32 %v289, 4294901760
        %1620 = vmatpush.msra.mxu0 %v1619
        %v1621 = vand.u32 %v288, 4294901760
        %1622 = vmatpush.msra.mxu0 %v1621
        %v1623 = vand.u32 %v1230, 4294901760
        %1624 = vmatmul.f32.gmra.mxu0 %v1623
        %v1625 = vpop.f32.mrf.mxu0
        %v1626 = vadd.f32 %v1581, %v1625
        %v1627 = vand.u32 %v1231, 4294901760
        %1628 = vmatmul.f32.gmra.mxu0 %v1627
        %v1629 = vpop.f32.mrf.mxu0
        %v1630 = vadd.f32 %v1585, %v1629
        %v1631 = vand.u32 %v1232, 4294901760
        %1632 = vmatmul.f32.gmra.mxu0 %v1631
        %v1633 = vpop.f32.mrf.mxu0
        %v1634 = vadd.f32 %v1589, %v1633
        %1635 = vdwg.mxu0
        %v1636 = vmul.f32 %v745, %v745
        %v1637 = vmul.f32 %v749, %v749
        %v1638 = vmul.f32 %v753, %v753
        %v1639 = vmul.f32 %v1636, 0.012345679
        %v1640 = vmul.f32 %v1637, 0.012345679
        %v1641 = vmul.f32 %v1638, 0.012345679
        %v1642 = vsub.f32 %v1626, %v1639
        %v1643 = vsub.f32 %v1630, %v1640
        %v1644 = vsub.f32 %v1634, %v1641
        %v1645 = vmul.f32 %v307, %v307
        %v1646 = vmul.f32 %v308, %v308
        %v1647 = vmul.f32 %v309, %v309
        %v1648 = vrot.slane %v1645, 1
        %v1649 = vrot.slane %v1646, 1
        %v1650 = vrot.slane %v1647, 1
        %v1651 = vsel %vm315, %v1649, %v1650
        %v1652 = vsel %vm315, %v1648, %v1649
        %v1653 = vsel %vm315, %v1650, %v1648
        %v1654 = vadd.f32 %v1645, %v1652
        %v1655 = vadd.f32 %v1646, %v1651
        %v1656 = vadd.f32 %v1647, %v1653
        %v1657 = vrot.slane %v1645, 7
        %v1658 = vrot.slane %v1646, 7
        %v1659 = vrot.slane %v1647, 7
        %v1660 = vsel %vm325, %v1658, %v1659
        %v1661 = vsel %vm325, %v1657, %v1658
        %v1662 = vsel %vm325, %v1659, %v1657
        %v1663 = vadd.f32 %v1654, %v1662
        %v1664 = vadd.f32 %v1655, %v1661
        %v1665 = vadd.f32 %v1656, %v1660
        %v1666 = vrot.slane %v1663, 3
        %v1667 = vrot.slane %v1664, 3
        %v1668 = vrot.slane %v1665, 3
        %v1669 = vsel %vm335, %v1667, %v1668
        %v1670 = vsel %vm335, %v1666, %v1667
        %v1671 = vsel %vm335, %v1668, %v1666
        %v1672 = vadd.f32 %v1663, %v1670
        %v1673 = vadd.f32 %v1664, %v1669
        %v1674 = vadd.f32 %v1665, %v1671
        %v1675 = vrot.slane %v1663, 5
        %v1676 = vrot.slane %v1664, 5
        %v1677 = vrot.slane %v1665, 5
        %v1678 = vsel %vm345, %v1676, %v1677
        %v1679 = vsel %vm345, %v1675, %v1676
        %v1680 = vsel %vm345, %v1677, %v1675
        %v1681 = vadd.f32 %v1672, %v1680
        %v1682 = vadd.f32 %v1673, %v1679
        %v1683 = vadd.f32 %v1674, %v1678
        %v1684 = vand.u32 %v303, 4294901760
        %1685 = vmatpush.msra.mxu0 %v1684
        %v1686 = vand.u32 %v302, 4294901760
        %1687 = vmatpush.msra.mxu0 %v1686
        %v1688 = vand.u32 %v301, 4294901760
        %1689 = vmatpush.msra.mxu0 %v1688
        %v1690 = vand.u32 %v300, 4294901760
        %1691 = vmatpush.msra.mxu0 %v1690
        %v1692 = vand.u32 %v299, 4294901760
        %1693 = vmatpush.msra.mxu0 %v1692
        %v1694 = vand.u32 %v298, 4294901760
        %1695 = vmatpush.msra.mxu0 %v1694
        %v1696 = vand.u32 %v297, 4294901760
        %1697 = vmatpush.msra.mxu0 %v1696
        %v1698 = vand.u32 %v296, 4294901760
        %1699 = vmatpush.msra.mxu0 %v1698
        %v1700 = vand.u32 %v295, 4294901760
        %1701 = vmatpush.msra.mxu0 %v1700
        %v1702 = vand.u32 %v294, 4294901760
        %1703 = vmatpush.msra.mxu0 %v1702
        %v1704 = vand.u32 %v293, 4294901760
        %1705 = vmatpush.msra.mxu0 %v1704
        %v1706 = vand.u32 %v292, 4294901760
        %1707 = vmatpush.msra.mxu0 %v1706
        %v1708 = vand.u32 %v291, 4294901760
        %1709 = vmatpush.msra.mxu0 %v1708
        %v1710 = vand.u32 %v290, 4294901760
        %1711 = vmatpush.msra.mxu0 %v1710
        %v1712 = vand.u32 %v289, 4294901760
        %1713 = vmatpush.msra.mxu0 %v1712
        %v1714 = vand.u32 %v288, 4294901760
        %1715 = vmatpush.msra.mxu0 %v1714
        %v1716 = vand.u32 %v1681, 4294901760
        %v1717 = vsub.f32 %v1681, %v1716
        %v1718 = vand.u32 %v1717, 4294901760
        %v1719 = vsub.f32 %v1717, %v1718
        %v1720 = vand.u32 %v1719, 4294901760
        %1721 = vmatmul.f32.gmra.mxu0 %v1720
        %v1722 = vpop.f32.mrf.mxu0
        %v1723 = vadd.f32 0.0, %v1722
        %v1724 = vand.u32 %v1682, 4294901760
        %v1725 = vsub.f32 %v1682, %v1724
        %v1726 = vand.u32 %v1725, 4294901760
        %v1727 = vsub.f32 %v1725, %v1726
        %v1728 = vand.u32 %v1727, 4294901760
        %1729 = vmatmul.f32.gmra.mxu0 %v1728
        %v1730 = vpop.f32.mrf.mxu0
        %v1731 = vadd.f32 0.0, %v1730
        %v1732 = vand.u32 %v1683, 4294901760
        %v1733 = vsub.f32 %v1683, %v1732
        %v1734 = vand.u32 %v1733, 4294901760
        %v1735 = vsub.f32 %v1733, %v1734
        %v1736 = vand.u32 %v1735, 4294901760
        %1737 = vmatmul.f32.gmra.mxu0 %v1736
        %v1738 = vpop.f32.mrf.mxu0
        %v1739 = vadd.f32 0.0, %v1738
        %1740 = vdwg.mxu0
        %v1741 = vand.u32 %v303, 4294901760
        %v1742 = vsub.f32 %v303, %v1741
        %v1743 = vand.u32 %v1742, 4294901760
        %v1744 = vsub.f32 %v1742, %v1743
        %v1745 = vand.u32 %v1744, 4294901760
        %1746 = vmatpush.msra.mxu0 %v1745
        %v1747 = vand.u32 %v302, 4294901760
        %v1748 = vsub.f32 %v302, %v1747
        %v1749 = vand.u32 %v1748, 4294901760
        %v1750 = vsub.f32 %v1748, %v1749
        %v1751 = vand.u32 %v1750, 4294901760
        %1752 = vmatpush.msra.mxu0 %v1751
        %v1753 = vand.u32 %v301, 4294901760
        %v1754 = vsub.f32 %v301, %v1753
        %v1755 = vand.u32 %v1754, 4294901760
        %v1756 = vsub.f32 %v1754, %v1755
        %v1757 = vand.u32 %v1756, 4294901760
        %1758 = vmatpush.msra.mxu0 %v1757
        %v1759 = vand.u32 %v300, 4294901760
        %v1760 = vsub.f32 %v300, %v1759
        %v1761 = vand.u32 %v1760, 4294901760
        %v1762 = vsub.f32 %v1760, %v1761
        %v1763 = vand.u32 %v1762, 4294901760
        %1764 = vmatpush.msra.mxu0 %v1763
        %v1765 = vand.u32 %v299, 4294901760
        %v1766 = vsub.f32 %v299, %v1765
        %v1767 = vand.u32 %v1766, 4294901760
        %v1768 = vsub.f32 %v1766, %v1767
        %v1769 = vand.u32 %v1768, 4294901760
        %1770 = vmatpush.msra.mxu0 %v1769
        %v1771 = vand.u32 %v298, 4294901760
        %v1772 = vsub.f32 %v298, %v1771
        %v1773 = vand.u32 %v1772, 4294901760
        %v1774 = vsub.f32 %v1772, %v1773
        %v1775 = vand.u32 %v1774, 4294901760
        %1776 = vmatpush.msra.mxu0 %v1775
        %v1777 = vand.u32 %v297, 4294901760
        %v1778 = vsub.f32 %v297, %v1777
        %v1779 = vand.u32 %v1778, 4294901760
        %v1780 = vsub.f32 %v1778, %v1779
        %v1781 = vand.u32 %v1780, 4294901760
        %1782 = vmatpush.msra.mxu0 %v1781
        %v1783 = vand.u32 %v296, 4294901760
        %v1784 = vsub.f32 %v296, %v1783
        %v1785 = vand.u32 %v1784, 4294901760
        %v1786 = vsub.f32 %v1784, %v1785
        %v1787 = vand.u32 %v1786, 4294901760
        %1788 = vmatpush.msra.mxu0 %v1787
        %v1789 = vand.u32 %v295, 4294901760
        %v1790 = vsub.f32 %v295, %v1789
        %v1791 = vand.u32 %v1790, 4294901760
        %v1792 = vsub.f32 %v1790, %v1791
        %v1793 = vand.u32 %v1792, 4294901760
        %1794 = vmatpush.msra.mxu0 %v1793
        %v1795 = vand.u32 %v294, 4294901760
        %v1796 = vsub.f32 %v294, %v1795
        %v1797 = vand.u32 %v1796, 4294901760
        %v1798 = vsub.f32 %v1796, %v1797
        %v1799 = vand.u32 %v1798, 4294901760
        %1800 = vmatpush.msra.mxu0 %v1799
        %v1801 = vand.u32 %v293, 4294901760
        %v1802 = vsub.f32 %v293, %v1801
        %v1803 = vand.u32 %v1802, 4294901760
        %v1804 = vsub.f32 %v1802, %v1803
        %v1805 = vand.u32 %v1804, 4294901760
        %1806 = vmatpush.msra.mxu0 %v1805
        %v1807 = vand.u32 %v292, 4294901760
        %v1808 = vsub.f32 %v292, %v1807
        %v1809 = vand.u32 %v1808, 4294901760
        %v1810 = vsub.f32 %v1808, %v1809
        %v1811 = vand.u32 %v1810, 4294901760
        %1812 = vmatpush.msra.mxu0 %v1811
        %v1813 = vand.u32 %v291, 4294901760
        %v1814 = vsub.f32 %v291, %v1813
        %v1815 = vand.u32 %v1814, 4294901760
        %v1816 = vsub.f32 %v1814, %v1815
        %v1817 = vand.u32 %v1816, 4294901760
        %1818 = vmatpush.msra.mxu0 %v1817
        %v1819 = vand.u32 %v290, 4294901760
        %v1820 = vsub.f32 %v290, %v1819
        %v1821 = vand.u32 %v1820, 4294901760
        %v1822 = vsub.f32 %v1820, %v1821
        %v1823 = vand.u32 %v1822, 4294901760
        %1824 = vmatpush.msra.mxu0 %v1823
        %v1825 = vand.u32 %v289, 4294901760
        %v1826 = vsub.f32 %v289, %v1825
        %v1827 = vand.u32 %v1826, 4294901760
        %v1828 = vsub.f32 %v1826, %v1827
        %v1829 = vand.u32 %v1828, 4294901760
        %1830 = vmatpush.msra.mxu0 %v1829
        %v1831 = vand.u32 %v288, 4294901760
        %v1832 = vsub.f32 %v288, %v1831
        %v1833 = vand.u32 %v1832, 4294901760
        %v1834 = vsub.f32 %v1832, %v1833
        %v1835 = vand.u32 %v1834, 4294901760
        %1836 = vmatpush.msra.mxu0 %v1835
        %v1837 = vand.u32 %v1681, 4294901760
        %1838 = vmatmul.f32.gmra.mxu0 %v1837
        %v1839 = vpop.f32.mrf.mxu0
        %v1840 = vadd.f32 %v1723, %v1839
        %v1841 = vand.u32 %v1682, 4294901760
        %1842 = vmatmul.f32.gmra.mxu0 %v1841
        %v1843 = vpop.f32.mrf.mxu0
        %v1844 = vadd.f32 %v1731, %v1843
        %v1845 = vand.u32 %v1683, 4294901760
        %1846 = vmatmul.f32.gmra.mxu0 %v1845
        %v1847 = vpop.f32.mrf.mxu0
        %v1848 = vadd.f32 %v1739, %v1847
        %1849 = vdwg.mxu0
        %v1850 = vand.u32 %v303, 4294901760
        %v1851 = vsub.f32 %v303, %v1850
        %1852 = vmatpush.msra.mxu0 %v1851
        %v1853 = vand.u32 %v302, 4294901760
        %v1854 = vsub.f32 %v302, %v1853
        %1855 = vmatpush.msra.mxu0 %v1854
        %v1856 = vand.u32 %v301, 4294901760
        %v1857 = vsub.f32 %v301, %v1856
        %1858 = vmatpush.msra.mxu0 %v1857
        %v1859 = vand.u32 %v300, 4294901760
        %v1860 = vsub.f32 %v300, %v1859
        %1861 = vmatpush.msra.mxu0 %v1860
        %v1862 = vand.u32 %v299, 4294901760
        %v1863 = vsub.f32 %v299, %v1862
        %1864 = vmatpush.msra.mxu0 %v1863
        %v1865 = vand.u32 %v298, 4294901760
        %v1866 = vsub.f32 %v298, %v1865
        %1867 = vmatpush.msra.mxu0 %v1866
        %v1868 = vand.u32 %v297, 4294901760
        %v1869 = vsub.f32 %v297, %v1868
        %1870 = vmatpush.msra.mxu0 %v1869
        %v1871 = vand.u32 %v296, 4294901760
        %v1872 = vsub.f32 %v296, %v1871
        %1873 = vmatpush.msra.mxu0 %v1872
        %v1874 = vand.u32 %v295, 4294901760
        %v1875 = vsub.f32 %v295, %v1874
        %1876 = vmatpush.msra.mxu0 %v1875
        %v1877 = vand.u32 %v294, 4294901760
        %v1878 = vsub.f32 %v294, %v1877
        %1879 = vmatpush.msra.mxu0 %v1878
        %v1880 = vand.u32 %v293, 4294901760
        %v1881 = vsub.f32 %v293, %v1880
        %1882 = vmatpush.msra.mxu0 %v1881
        %v1883 = vand.u32 %v292, 4294901760
        %v1884 = vsub.f32 %v292, %v1883
        %1885 = vmatpush.msra.mxu0 %v1884
        %v1886 = vand.u32 %v291, 4294901760
        %v1887 = vsub.f32 %v291, %v1886
        %1888 = vmatpush.msra.mxu0 %v1887
        %v1889 = vand.u32 %v290, 4294901760
        %v1890 = vsub.f32 %v290, %v1889
        %1891 = vmatpush.msra.mxu0 %v1890
        %v1892 = vand.u32 %v289, 4294901760
        %v1893 = vsub.f32 %v289, %v1892
        %1894 = vmatpush.msra.mxu0 %v1893
        %v1895 = vand.u32 %v288, 4294901760
        %v1896 = vsub.f32 %v288, %v1895
        %1897 = vmatpush.msra.mxu0 %v1896
        %v1898 = vand.u32 %v1681, 4294901760
        %v1899 = vsub.f32 %v1681, %v1898
        %1900 = vmatmul.f32.gmra.mxu0 %v1899
        %v1901 = vpop.f32.mrf.mxu0
        %v1902 = vadd.f32 %v1840, %v1901
        %v1903 = vand.u32 %v1682, 4294901760
        %v1904 = vsub.f32 %v1682, %v1903
        %1905 = vmatmul.f32.gmra.mxu0 %v1904
        %v1906 = vpop.f32.mrf.mxu0
        %v1907 = vadd.f32 %v1844, %v1906
        %v1908 = vand.u32 %v1683, 4294901760
        %v1909 = vsub.f32 %v1683, %v1908
        %1910 = vmatmul.f32.gmra.mxu0 %v1909
        %v1911 = vpop.f32.mrf.mxu0
        %v1912 = vadd.f32 %v1848, %v1911
        %1913 = vdwg.mxu0
        %v1914 = vand.u32 %v303, 4294901760
        %1915 = vmatpush.msra.mxu0 %v1914
        %v1916 = vand.u32 %v302, 4294901760
        %1917 = vmatpush.msra.mxu0 %v1916
        %v1918 = vand.u32 %v301, 4294901760
        %1919 = vmatpush.msra.mxu0 %v1918
        %v1920 = vand.u32 %v300, 4294901760
        %1921 = vmatpush.msra.mxu0 %v1920
        %v1922 = vand.u32 %v299, 4294901760
        %1923 = vmatpush.msra.mxu0 %v1922
        %v1924 = vand.u32 %v298, 4294901760
        %1925 = vmatpush.msra.mxu0 %v1924
        %v1926 = vand.u32 %v297, 4294901760
        %1927 = vmatpush.msra.mxu0 %v1926
        %v1928 = vand.u32 %v296, 4294901760
        %1929 = vmatpush.msra.mxu0 %v1928
        %v1930 = vand.u32 %v295, 4294901760
        %1931 = vmatpush.msra.mxu0 %v1930
        %v1932 = vand.u32 %v294, 4294901760
        %1933 = vmatpush.msra.mxu0 %v1932
        %v1934 = vand.u32 %v293, 4294901760
        %1935 = vmatpush.msra.mxu0 %v1934
        %v1936 = vand.u32 %v292, 4294901760
        %1937 = vmatpush.msra.mxu0 %v1936
        %v1938 = vand.u32 %v291, 4294901760
        %1939 = vmatpush.msra.mxu0 %v1938
        %v1940 = vand.u32 %v290, 4294901760
        %1941 = vmatpush.msra.mxu0 %v1940
        %v1942 = vand.u32 %v289, 4294901760
        %1943 = vmatpush.msra.mxu0 %v1942
        %v1944 = vand.u32 %v288, 4294901760
        %1945 = vmatpush.msra.mxu0 %v1944
        %v1946 = vand.u32 %v1681, 4294901760
        %v1947 = vsub.f32 %v1681, %v1946
        %v1948 = vand.u32 %v1947, 4294901760
        %1949 = vmatmul.f32.gmra.mxu0 %v1948
        %v1950 = vpop.f32.mrf.mxu0
        %v1951 = vadd.f32 %v1902, %v1950
        %v1952 = vand.u32 %v1682, 4294901760
        %v1953 = vsub.f32 %v1682, %v1952
        %v1954 = vand.u32 %v1953, 4294901760
        %1955 = vmatmul.f32.gmra.mxu0 %v1954
        %v1956 = vpop.f32.mrf.mxu0
        %v1957 = vadd.f32 %v1907, %v1956
        %v1958 = vand.u32 %v1683, 4294901760
        %v1959 = vsub.f32 %v1683, %v1958
        %v1960 = vand.u32 %v1959, 4294901760
        %1961 = vmatmul.f32.gmra.mxu0 %v1960
        %v1962 = vpop.f32.mrf.mxu0
        %v1963 = vadd.f32 %v1912, %v1962
        %1964 = vdwg.mxu0
        %v1965 = vand.u32 %v303, 4294901760
        %v1966 = vsub.f32 %v303, %v1965
        %v1967 = vand.u32 %v1966, 4294901760
        %1968 = vmatpush.msra.mxu0 %v1967
        %v1969 = vand.u32 %v302, 4294901760
        %v1970 = vsub.f32 %v302, %v1969
        %v1971 = vand.u32 %v1970, 4294901760
        %1972 = vmatpush.msra.mxu0 %v1971
        %v1973 = vand.u32 %v301, 4294901760
        %v1974 = vsub.f32 %v301, %v1973
        %v1975 = vand.u32 %v1974, 4294901760
        %1976 = vmatpush.msra.mxu0 %v1975
        %v1977 = vand.u32 %v300, 4294901760
        %v1978 = vsub.f32 %v300, %v1977
        %v1979 = vand.u32 %v1978, 4294901760
        %1980 = vmatpush.msra.mxu0 %v1979
        %v1981 = vand.u32 %v299, 4294901760
        %v1982 = vsub.f32 %v299, %v1981
        %v1983 = vand.u32 %v1982, 4294901760
        %1984 = vmatpush.msra.mxu0 %v1983
        %v1985 = vand.u32 %v298, 4294901760
        %v1986 = vsub.f32 %v298, %v1985
        %v1987 = vand.u32 %v1986, 4294901760
        %1988 = vmatpush.msra.mxu0 %v1987
        %v1989 = vand.u32 %v297, 4294901760
        %v1990 = vsub.f32 %v297, %v1989
        %v1991 = vand.u32 %v1990, 4294901760
        %1992 = vmatpush.msra.mxu0 %v1991
        %v1993 = vand.u32 %v296, 4294901760
        %v1994 = vsub.f32 %v296, %v1993
        %v1995 = vand.u32 %v1994, 4294901760
        %1996 = vmatpush.msra.mxu0 %v1995
        %v1997 = vand.u32 %v295, 4294901760
        %v1998 = vsub.f32 %v295, %v1997
        %v1999 = vand.u32 %v1998, 4294901760
        %2000 = vmatpush.msra.mxu0 %v1999
        %v2001 = vand.u32 %v294, 4294901760
        %v2002 = vsub.f32 %v294, %v2001
        %v2003 = vand.u32 %v2002, 4294901760
        %2004 = vmatpush.msra.mxu0 %v2003
        %v2005 = vand.u32 %v293, 4294901760
        %v2006 = vsub.f32 %v293, %v2005
        %v2007 = vand.u32 %v2006, 4294901760
        %2008 = vmatpush.msra.mxu0 %v2007
        %v2009 = vand.u32 %v292, 4294901760
        %v2010 = vsub.f32 %v292, %v2009
        %v2011 = vand.u32 %v2010, 4294901760
        %2012 = vmatpush.msra.mxu0 %v2011
        %v2013 = vand.u32 %v291, 4294901760
        %v2014 = vsub.f32 %v291, %v2013
        %v2015 = vand.u32 %v2014, 4294901760
        %2016 = vmatpush.msra.mxu0 %v2015
        %v2017 = vand.u32 %v290, 4294901760
        %v2018 = vsub.f32 %v290, %v2017
        %v2019 = vand.u32 %v2018, 4294901760
        %2020 = vmatpush.msra.mxu0 %v2019
        %v2021 = vand.u32 %v289, 4294901760
        %v2022 = vsub.f32 %v289, %v2021
        %v2023 = vand.u32 %v2022, 4294901760
        %2024 = vmatpush.msra.mxu0 %v2023
        %v2025 = vand.u32 %v288, 4294901760
        %v2026 = vsub.f32 %v288, %v2025
        %v2027 = vand.u32 %v2026, 4294901760
        %2028 = vmatpush.msra.mxu0 %v2027
        %v2029 = vand.u32 %v1681, 4294901760
        %2030 = vmatmul.f32.gmra.mxu0 %v2029
        %v2031 = vpop.f32.mrf.mxu0
        %v2032 = vadd.f32 %v1951, %v2031
        %v2033 = vand.u32 %v1682, 4294901760
        %2034 = vmatmul.f32.gmra.mxu0 %v2033
        %v2035 = vpop.f32.mrf.mxu0
        %v2036 = vadd.f32 %v1957, %v2035
        %v2037 = vand.u32 %v1683, 4294901760
        %2038 = vmatmul.f32.gmra.mxu0 %v2037
        %v2039 = vpop.f32.mrf.mxu0
        %v2040 = vadd.f32 %v1963, %v2039
        %2041 = vdwg.mxu0
        %v2042 = vand.u32 %v303, 4294901760
        %2043 = vmatpush.msra.mxu0 %v2042
        %v2044 = vand.u32 %v302, 4294901760
        %2045 = vmatpush.msra.mxu0 %v2044
        %v2046 = vand.u32 %v301, 4294901760
        %2047 = vmatpush.msra.mxu0 %v2046
        %v2048 = vand.u32 %v300, 4294901760
        %2049 = vmatpush.msra.mxu0 %v2048
        %v2050 = vand.u32 %v299, 4294901760
        %2051 = vmatpush.msra.mxu0 %v2050
        %v2052 = vand.u32 %v298, 4294901760
        %2053 = vmatpush.msra.mxu0 %v2052
        %v2054 = vand.u32 %v297, 4294901760
        %2055 = vmatpush.msra.mxu0 %v2054
        %v2056 = vand.u32 %v296, 4294901760
        %2057 = vmatpush.msra.mxu0 %v2056
        %v2058 = vand.u32 %v295, 4294901760
        %2059 = vmatpush.msra.mxu0 %v2058
        %v2060 = vand.u32 %v294, 4294901760
        %2061 = vmatpush.msra.mxu0 %v2060
        %v2062 = vand.u32 %v293, 4294901760
        %2063 = vmatpush.msra.mxu0 %v2062
        %v2064 = vand.u32 %v292, 4294901760
        %2065 = vmatpush.msra.mxu0 %v2064
        %v2066 = vand.u32 %v291, 4294901760
        %2067 = vmatpush.msra.mxu0 %v2066
        %v2068 = vand.u32 %v290, 4294901760
        %2069 = vmatpush.msra.mxu0 %v2068
        %v2070 = vand.u32 %v289, 4294901760
        %2071 = vmatpush.msra.mxu0 %v2070
        %v2072 = vand.u32 %v288, 4294901760
        %2073 = vmatpush.msra.mxu0 %v2072
        %v2074 = vand.u32 %v1681, 4294901760
        %2075 = vmatmul.f32.gmra.mxu0 %v2074
        %v2076 = vpop.f32.mrf.mxu0
        %v2077 = vadd.f32 %v2032, %v2076
        %v2078 = vand.u32 %v1682, 4294901760
        %2079 = vmatmul.f32.gmra.mxu0 %v2078
        %v2080 = vpop.f32.mrf.mxu0
        %v2081 = vadd.f32 %v2036, %v2080
        %v2082 = vand.u32 %v1683, 4294901760
        %2083 = vmatmul.f32.gmra.mxu0 %v2082
        %v2084 = vpop.f32.mrf.mxu0
        %v2085 = vadd.f32 %v2040, %v2084
        %2086 = vdwg.mxu0
        %v2087 = vmul.f32 %v1184, %v1184
        %v2088 = vmul.f32 %v1188, %v1188
        %v2089 = vmul.f32 %v1192, %v1192
        %v2090 = vmul.f32 %v2087, 0.012345679
        %v2091 = vmul.f32 %v2088, 0.012345679
        %v2092 = vmul.f32 %v2089, 0.012345679
        %v2093 = vsub.f32 %v2077, %v2090
        %v2094 = vsub.f32 %v2081, %v2091
        %v2095 = vsub.f32 %v2085, %v2092
        %v2096 = vmul.f32 %v304, %v307
        %v2097 = vmul.f32 %v305, %v308
        %v2098 = vmul.f32 %v306, %v309
        %v2099 = vrot.slane %v2096, 1
        %v2100 = vrot.slane %v2097, 1
        %v2101 = vrot.slane %v2098, 1
        %v2102 = vsel %vm315, %v2100, %v2101
        %v2103 = vsel %vm315, %v2099, %v2100
        %v2104 = vsel %vm315, %v2101, %v2099
        %v2105 = vadd.f32 %v2096, %v2103
        %v2106 = vadd.f32 %v2097, %v2102
        %v2107 = vadd.f32 %v2098, %v2104
        %v2108 = vrot.slane %v2096, 7
        %v2109 = vrot.slane %v2097, 7
        %v2110 = vrot.slane %v2098, 7
        %v2111 = vsel %vm325, %v2109, %v2110
        %v2112 = vsel %vm325, %v2108, %v2109
        %v2113 = vsel %vm325, %v2110, %v2108
        %v2114 = vadd.f32 %v2105, %v2113
        %v2115 = vadd.f32 %v2106, %v2112
        %v2116 = vadd.f32 %v2107, %v2111
        %v2117 = vrot.slane %v2114, 3
        %v2118 = vrot.slane %v2115, 3
        %v2119 = vrot.slane %v2116, 3
        %v2120 = vsel %vm335, %v2118, %v2119
        %v2121 = vsel %vm335, %v2117, %v2118
        %v2122 = vsel %vm335, %v2119, %v2117
        %v2123 = vadd.f32 %v2114, %v2121
        %v2124 = vadd.f32 %v2115, %v2120
        %v2125 = vadd.f32 %v2116, %v2122
        %v2126 = vrot.slane %v2114, 5
        %v2127 = vrot.slane %v2115, 5
        %v2128 = vrot.slane %v2116, 5
        %v2129 = vsel %vm345, %v2127, %v2128
        %v2130 = vsel %vm345, %v2126, %v2127
        %v2131 = vsel %vm345, %v2128, %v2126
        %v2132 = vadd.f32 %v2123, %v2131
        %v2133 = vadd.f32 %v2124, %v2130
        %v2134 = vadd.f32 %v2125, %v2129
        %v2135 = vand.u32 %v303, 4294901760
        %2136 = vmatpush.msra.mxu0 %v2135
        %v2137 = vand.u32 %v302, 4294901760
        %2138 = vmatpush.msra.mxu0 %v2137
        %v2139 = vand.u32 %v301, 4294901760
        %2140 = vmatpush.msra.mxu0 %v2139
        %v2141 = vand.u32 %v300, 4294901760
        %2142 = vmatpush.msra.mxu0 %v2141
        %v2143 = vand.u32 %v299, 4294901760
        %2144 = vmatpush.msra.mxu0 %v2143
        %v2145 = vand.u32 %v298, 4294901760
        %2146 = vmatpush.msra.mxu0 %v2145
        %v2147 = vand.u32 %v297, 4294901760
        %2148 = vmatpush.msra.mxu0 %v2147
        %v2149 = vand.u32 %v296, 4294901760
        %2150 = vmatpush.msra.mxu0 %v2149
        %v2151 = vand.u32 %v295, 4294901760
        %2152 = vmatpush.msra.mxu0 %v2151
        %v2153 = vand.u32 %v294, 4294901760
        %2154 = vmatpush.msra.mxu0 %v2153
        %v2155 = vand.u32 %v293, 4294901760
        %2156 = vmatpush.msra.mxu0 %v2155
        %v2157 = vand.u32 %v292, 4294901760
        %2158 = vmatpush.msra.mxu0 %v2157
        %v2159 = vand.u32 %v291, 4294901760
        %2160 = vmatpush.msra.mxu0 %v2159
        %v2161 = vand.u32 %v290, 4294901760
        %2162 = vmatpush.msra.mxu0 %v2161
        %v2163 = vand.u32 %v289, 4294901760
        %2164 = vmatpush.msra.mxu0 %v2163
        %v2165 = vand.u32 %v288, 4294901760
        %2166 = vmatpush.msra.mxu0 %v2165
        %v2167 = vand.u32 %v2132, 4294901760
        %v2168 = vsub.f32 %v2132, %v2167
        %v2169 = vand.u32 %v2168, 4294901760
        %v2170 = vsub.f32 %v2168, %v2169
        %v2171 = vand.u32 %v2170, 4294901760
        %2172 = vmatmul.f32.gmra.mxu0 %v2171
        %v2173 = vpop.f32.mrf.mxu0
        %v2174 = vadd.f32 0.0, %v2173
        %v2175 = vand.u32 %v2133, 4294901760
        %v2176 = vsub.f32 %v2133, %v2175
        %v2177 = vand.u32 %v2176, 4294901760
        %v2178 = vsub.f32 %v2176, %v2177
        %v2179 = vand.u32 %v2178, 4294901760
        %2180 = vmatmul.f32.gmra.mxu0 %v2179
        %v2181 = vpop.f32.mrf.mxu0
        %v2182 = vadd.f32 0.0, %v2181
        %v2183 = vand.u32 %v2134, 4294901760
        %v2184 = vsub.f32 %v2134, %v2183
        %v2185 = vand.u32 %v2184, 4294901760
        %v2186 = vsub.f32 %v2184, %v2185
        %v2187 = vand.u32 %v2186, 4294901760
        %2188 = vmatmul.f32.gmra.mxu0 %v2187
        %v2189 = vpop.f32.mrf.mxu0
        %v2190 = vadd.f32 0.0, %v2189
        %2191 = vdwg.mxu0
        %v2192 = vand.u32 %v303, 4294901760
        %v2193 = vsub.f32 %v303, %v2192
        %v2194 = vand.u32 %v2193, 4294901760
        %v2195 = vsub.f32 %v2193, %v2194
        %v2196 = vand.u32 %v2195, 4294901760
        %2197 = vmatpush.msra.mxu0 %v2196
        %v2198 = vand.u32 %v302, 4294901760
        %v2199 = vsub.f32 %v302, %v2198
        %v2200 = vand.u32 %v2199, 4294901760
        %v2201 = vsub.f32 %v2199, %v2200
        %v2202 = vand.u32 %v2201, 4294901760
        %2203 = vmatpush.msra.mxu0 %v2202
        %v2204 = vand.u32 %v301, 4294901760
        %v2205 = vsub.f32 %v301, %v2204
        %v2206 = vand.u32 %v2205, 4294901760
        %v2207 = vsub.f32 %v2205, %v2206
        %v2208 = vand.u32 %v2207, 4294901760
        %2209 = vmatpush.msra.mxu0 %v2208
        %v2210 = vand.u32 %v300, 4294901760
        %v2211 = vsub.f32 %v300, %v2210
        %v2212 = vand.u32 %v2211, 4294901760
        %v2213 = vsub.f32 %v2211, %v2212
        %v2214 = vand.u32 %v2213, 4294901760
        %2215 = vmatpush.msra.mxu0 %v2214
        %v2216 = vand.u32 %v299, 4294901760
        %v2217 = vsub.f32 %v299, %v2216
        %v2218 = vand.u32 %v2217, 4294901760
        %v2219 = vsub.f32 %v2217, %v2218
        %v2220 = vand.u32 %v2219, 4294901760
        %2221 = vmatpush.msra.mxu0 %v2220
        %v2222 = vand.u32 %v298, 4294901760
        %v2223 = vsub.f32 %v298, %v2222
        %v2224 = vand.u32 %v2223, 4294901760
        %v2225 = vsub.f32 %v2223, %v2224
        %v2226 = vand.u32 %v2225, 4294901760
        %2227 = vmatpush.msra.mxu0 %v2226
        %v2228 = vand.u32 %v297, 4294901760
        %v2229 = vsub.f32 %v297, %v2228
        %v2230 = vand.u32 %v2229, 4294901760
        %v2231 = vsub.f32 %v2229, %v2230
        %v2232 = vand.u32 %v2231, 4294901760
        %2233 = vmatpush.msra.mxu0 %v2232
        %v2234 = vand.u32 %v296, 4294901760
        %v2235 = vsub.f32 %v296, %v2234
        %v2236 = vand.u32 %v2235, 4294901760
        %v2237 = vsub.f32 %v2235, %v2236
        %v2238 = vand.u32 %v2237, 4294901760
        %2239 = vmatpush.msra.mxu0 %v2238
        %v2240 = vand.u32 %v295, 4294901760
        %v2241 = vsub.f32 %v295, %v2240
        %v2242 = vand.u32 %v2241, 4294901760
        %v2243 = vsub.f32 %v2241, %v2242
        %v2244 = vand.u32 %v2243, 4294901760
        %2245 = vmatpush.msra.mxu0 %v2244
        %v2246 = vand.u32 %v294, 4294901760
        %v2247 = vsub.f32 %v294, %v2246
        %v2248 = vand.u32 %v2247, 4294901760
        %v2249 = vsub.f32 %v2247, %v2248
        %v2250 = vand.u32 %v2249, 4294901760
        %2251 = vmatpush.msra.mxu0 %v2250
        %v2252 = vand.u32 %v293, 4294901760
        %v2253 = vsub.f32 %v293, %v2252
        %v2254 = vand.u32 %v2253, 4294901760
        %v2255 = vsub.f32 %v2253, %v2254
        %v2256 = vand.u32 %v2255, 4294901760
        %2257 = vmatpush.msra.mxu0 %v2256
        %v2258 = vand.u32 %v292, 4294901760
        %v2259 = vsub.f32 %v292, %v2258
        %v2260 = vand.u32 %v2259, 4294901760
        %v2261 = vsub.f32 %v2259, %v2260
        %v2262 = vand.u32 %v2261, 4294901760
        %2263 = vmatpush.msra.mxu0 %v2262
        %v2264 = vand.u32 %v291, 4294901760
        %v2265 = vsub.f32 %v291, %v2264
        %v2266 = vand.u32 %v2265, 4294901760
        %v2267 = vsub.f32 %v2265, %v2266
        %v2268 = vand.u32 %v2267, 4294901760
        %2269 = vmatpush.msra.mxu0 %v2268
        %v2270 = vand.u32 %v290, 4294901760
        %v2271 = vsub.f32 %v290, %v2270
        %v2272 = vand.u32 %v2271, 4294901760
        %v2273 = vsub.f32 %v2271, %v2272
        %v2274 = vand.u32 %v2273, 4294901760
        %2275 = vmatpush.msra.mxu0 %v2274
        %v2276 = vand.u32 %v289, 4294901760
        %v2277 = vsub.f32 %v289, %v2276
        %v2278 = vand.u32 %v2277, 4294901760
        %v2279 = vsub.f32 %v2277, %v2278
        %v2280 = vand.u32 %v2279, 4294901760
        %2281 = vmatpush.msra.mxu0 %v2280
        %v2282 = vand.u32 %v288, 4294901760
        %v2283 = vsub.f32 %v288, %v2282
        %v2284 = vand.u32 %v2283, 4294901760
        %v2285 = vsub.f32 %v2283, %v2284
        %v2286 = vand.u32 %v2285, 4294901760
        %2287 = vmatpush.msra.mxu0 %v2286
        %v2288 = vand.u32 %v2132, 4294901760
        %2289 = vmatmul.f32.gmra.mxu0 %v2288
        %v2290 = vpop.f32.mrf.mxu0
        %v2291 = vadd.f32 %v2174, %v2290
        %v2292 = vand.u32 %v2133, 4294901760
        %2293 = vmatmul.f32.gmra.mxu0 %v2292
        %v2294 = vpop.f32.mrf.mxu0
        %v2295 = vadd.f32 %v2182, %v2294
        %v2296 = vand.u32 %v2134, 4294901760
        %2297 = vmatmul.f32.gmra.mxu0 %v2296
        %v2298 = vpop.f32.mrf.mxu0
        %v2299 = vadd.f32 %v2190, %v2298
        %2300 = vdwg.mxu0
        %v2301 = vand.u32 %v303, 4294901760
        %v2302 = vsub.f32 %v303, %v2301
        %2303 = vmatpush.msra.mxu0 %v2302
        %v2304 = vand.u32 %v302, 4294901760
        %v2305 = vsub.f32 %v302, %v2304
        %2306 = vmatpush.msra.mxu0 %v2305
        %v2307 = vand.u32 %v301, 4294901760
        %v2308 = vsub.f32 %v301, %v2307
        %2309 = vmatpush.msra.mxu0 %v2308
        %v2310 = vand.u32 %v300, 4294901760
        %v2311 = vsub.f32 %v300, %v2310
        %2312 = vmatpush.msra.mxu0 %v2311
        %v2313 = vand.u32 %v299, 4294901760
        %v2314 = vsub.f32 %v299, %v2313
        %2315 = vmatpush.msra.mxu0 %v2314
        %v2316 = vand.u32 %v298, 4294901760
        %v2317 = vsub.f32 %v298, %v2316
        %2318 = vmatpush.msra.mxu0 %v2317
        %v2319 = vand.u32 %v297, 4294901760
        %v2320 = vsub.f32 %v297, %v2319
        %2321 = vmatpush.msra.mxu0 %v2320
        %v2322 = vand.u32 %v296, 4294901760
        %v2323 = vsub.f32 %v296, %v2322
        %2324 = vmatpush.msra.mxu0 %v2323
        %v2325 = vand.u32 %v295, 4294901760
        %v2326 = vsub.f32 %v295, %v2325
        %2327 = vmatpush.msra.mxu0 %v2326
        %v2328 = vand.u32 %v294, 4294901760
        %v2329 = vsub.f32 %v294, %v2328
        %2330 = vmatpush.msra.mxu0 %v2329
        %v2331 = vand.u32 %v293, 4294901760
        %v2332 = vsub.f32 %v293, %v2331
        %2333 = vmatpush.msra.mxu0 %v2332
        %v2334 = vand.u32 %v292, 4294901760
        %v2335 = vsub.f32 %v292, %v2334
        %2336 = vmatpush.msra.mxu0 %v2335
        %v2337 = vand.u32 %v291, 4294901760
        %v2338 = vsub.f32 %v291, %v2337
        %2339 = vmatpush.msra.mxu0 %v2338
        %v2340 = vand.u32 %v290, 4294901760
        %v2341 = vsub.f32 %v290, %v2340
        %2342 = vmatpush.msra.mxu0 %v2341
        %v2343 = vand.u32 %v289, 4294901760
        %v2344 = vsub.f32 %v289, %v2343
        %2345 = vmatpush.msra.mxu0 %v2344
        %v2346 = vand.u32 %v288, 4294901760
        %v2347 = vsub.f32 %v288, %v2346
        %2348 = vmatpush.msra.mxu0 %v2347
        %v2349 = vand.u32 %v2132, 4294901760
        %v2350 = vsub.f32 %v2132, %v2349
        %2351 = vmatmul.f32.gmra.mxu0 %v2350
        %v2352 = vpop.f32.mrf.mxu0
        %v2353 = vadd.f32 %v2291, %v2352
        %v2354 = vand.u32 %v2133, 4294901760
        %v2355 = vsub.f32 %v2133, %v2354
        %2356 = vmatmul.f32.gmra.mxu0 %v2355
        %v2357 = vpop.f32.mrf.mxu0
        %v2358 = vadd.f32 %v2295, %v2357
        %v2359 = vand.u32 %v2134, 4294901760
        %v2360 = vsub.f32 %v2134, %v2359
        %2361 = vmatmul.f32.gmra.mxu0 %v2360
        %v2362 = vpop.f32.mrf.mxu0
        %v2363 = vadd.f32 %v2299, %v2362
        %2364 = vdwg.mxu0
        %v2365 = vand.u32 %v303, 4294901760
        %2366 = vmatpush.msra.mxu0 %v2365
        %v2367 = vand.u32 %v302, 4294901760
        %2368 = vmatpush.msra.mxu0 %v2367
        %v2369 = vand.u32 %v301, 4294901760
        %2370 = vmatpush.msra.mxu0 %v2369
        %v2371 = vand.u32 %v300, 4294901760
        %2372 = vmatpush.msra.mxu0 %v2371
        %v2373 = vand.u32 %v299, 4294901760
        %2374 = vmatpush.msra.mxu0 %v2373
        %v2375 = vand.u32 %v298, 4294901760
        %2376 = vmatpush.msra.mxu0 %v2375
        %v2377 = vand.u32 %v297, 4294901760
        %2378 = vmatpush.msra.mxu0 %v2377
        %v2379 = vand.u32 %v296, 4294901760
        %2380 = vmatpush.msra.mxu0 %v2379
        %v2381 = vand.u32 %v295, 4294901760
        %2382 = vmatpush.msra.mxu0 %v2381
        %v2383 = vand.u32 %v294, 4294901760
        %2384 = vmatpush.msra.mxu0 %v2383
        %v2385 = vand.u32 %v293, 4294901760
        %2386 = vmatpush.msra.mxu0 %v2385
        %v2387 = vand.u32 %v292, 4294901760
        %2388 = vmatpush.msra.mxu0 %v2387
        %v2389 = vand.u32 %v291, 4294901760
        %2390 = vmatpush.msra.mxu0 %v2389
        %v2391 = vand.u32 %v290, 4294901760
        %2392 = vmatpush.msra.mxu0 %v2391
        %v2393 = vand.u32 %v289, 4294901760
        %2394 = vmatpush.msra.mxu0 %v2393
        %v2395 = vand.u32 %v288, 4294901760
        %2396 = vmatpush.msra.mxu0 %v2395
        %v2397 = vand.u32 %v2132, 4294901760
        %v2398 = vsub.f32 %v2132, %v2397
        %v2399 = vand.u32 %v2398, 4294901760
        %2400 = vmatmul.f32.gmra.mxu0 %v2399
        %v2401 = vpop.f32.mrf.mxu0
        %v2402 = vadd.f32 %v2353, %v2401
        %v2403 = vand.u32 %v2133, 4294901760
        %v2404 = vsub.f32 %v2133, %v2403
        %v2405 = vand.u32 %v2404, 4294901760
        %2406 = vmatmul.f32.gmra.mxu0 %v2405
        %v2407 = vpop.f32.mrf.mxu0
        %v2408 = vadd.f32 %v2358, %v2407
        %v2409 = vand.u32 %v2134, 4294901760
        %v2410 = vsub.f32 %v2134, %v2409
        %v2411 = vand.u32 %v2410, 4294901760
        %2412 = vmatmul.f32.gmra.mxu0 %v2411
        %v2413 = vpop.f32.mrf.mxu0
        %v2414 = vadd.f32 %v2363, %v2413
        %2415 = vdwg.mxu0
        %v2416 = vand.u32 %v303, 4294901760
        %v2417 = vsub.f32 %v303, %v2416
        %v2418 = vand.u32 %v2417, 4294901760
        %2419 = vmatpush.msra.mxu0 %v2418
        %v2420 = vand.u32 %v302, 4294901760
        %v2421 = vsub.f32 %v302, %v2420
        %v2422 = vand.u32 %v2421, 4294901760
        %2423 = vmatpush.msra.mxu0 %v2422
        %v2424 = vand.u32 %v301, 4294901760
        %v2425 = vsub.f32 %v301, %v2424
        %v2426 = vand.u32 %v2425, 4294901760
        %2427 = vmatpush.msra.mxu0 %v2426
        %v2428 = vand.u32 %v300, 4294901760
        %v2429 = vsub.f32 %v300, %v2428
        %v2430 = vand.u32 %v2429, 4294901760
        %2431 = vmatpush.msra.mxu0 %v2430
        %v2432 = vand.u32 %v299, 4294901760
        %v2433 = vsub.f32 %v299, %v2432
        %v2434 = vand.u32 %v2433, 4294901760
        %2435 = vmatpush.msra.mxu0 %v2434
        %v2436 = vand.u32 %v298, 4294901760
        %v2437 = vsub.f32 %v298, %v2436
        %v2438 = vand.u32 %v2437, 4294901760
        %2439 = vmatpush.msra.mxu0 %v2438
        %v2440 = vand.u32 %v297, 4294901760
        %v2441 = vsub.f32 %v297, %v2440
        %v2442 = vand.u32 %v2441, 4294901760
        %2443 = vmatpush.msra.mxu0 %v2442
        %v2444 = vand.u32 %v296, 4294901760
        %v2445 = vsub.f32 %v296, %v2444
        %v2446 = vand.u32 %v2445, 4294901760
        %2447 = vmatpush.msra.mxu0 %v2446
        %v2448 = vand.u32 %v295, 4294901760
        %v2449 = vsub.f32 %v295, %v2448
        %v2450 = vand.u32 %v2449, 4294901760
        %2451 = vmatpush.msra.mxu0 %v2450
        %v2452 = vand.u32 %v294, 4294901760
        %v2453 = vsub.f32 %v294, %v2452
        %v2454 = vand.u32 %v2453, 4294901760
        %2455 = vmatpush.msra.mxu0 %v2454
        %v2456 = vand.u32 %v293, 4294901760
        %v2457 = vsub.f32 %v293, %v2456
        %v2458 = vand.u32 %v2457, 4294901760
        %2459 = vmatpush.msra.mxu0 %v2458
        %v2460 = vand.u32 %v292, 4294901760
        %v2461 = vsub.f32 %v292, %v2460
        %v2462 = vand.u32 %v2461, 4294901760
        %2463 = vmatpush.msra.mxu0 %v2462
        %v2464 = vand.u32 %v291, 4294901760
        %v2465 = vsub.f32 %v291, %v2464
        %v2466 = vand.u32 %v2465, 4294901760
        %2467 = vmatpush.msra.mxu0 %v2466
        %v2468 = vand.u32 %v290, 4294901760
        %v2469 = vsub.f32 %v290, %v2468
        %v2470 = vand.u32 %v2469, 4294901760
        %2471 = vmatpush.msra.mxu0 %v2470
        %v2472 = vand.u32 %v289, 4294901760
        %v2473 = vsub.f32 %v289, %v2472
        %v2474 = vand.u32 %v2473, 4294901760
        %2475 = vmatpush.msra.mxu0 %v2474
        %v2476 = vand.u32 %v288, 4294901760
        %v2477 = vsub.f32 %v288, %v2476
        %v2478 = vand.u32 %v2477, 4294901760
        %2479 = vmatpush.msra.mxu0 %v2478
        %v2480 = vand.u32 %v2132, 4294901760
        %2481 = vmatmul.f32.gmra.mxu0 %v2480
        %v2482 = vpop.f32.mrf.mxu0
        %v2483 = vadd.f32 %v2402, %v2482
        %v2484 = vand.u32 %v2133, 4294901760
        %2485 = vmatmul.f32.gmra.mxu0 %v2484
        %v2486 = vpop.f32.mrf.mxu0
        %v2487 = vadd.f32 %v2408, %v2486
        %v2488 = vand.u32 %v2134, 4294901760
        %2489 = vmatmul.f32.gmra.mxu0 %v2488
        %v2490 = vpop.f32.mrf.mxu0
        %v2491 = vadd.f32 %v2414, %v2490
        %2492 = vdwg.mxu0
        %v2493 = vand.u32 %v303, 4294901760
        %2494 = vmatpush.msra.mxu0 %v2493
        %v2495 = vand.u32 %v302, 4294901760
        %2496 = vmatpush.msra.mxu0 %v2495
        %v2497 = vand.u32 %v301, 4294901760
        %2498 = vmatpush.msra.mxu0 %v2497
        %v2499 = vand.u32 %v300, 4294901760
        %2500 = vmatpush.msra.mxu0 %v2499
        %v2501 = vand.u32 %v299, 4294901760
        %2502 = vmatpush.msra.mxu0 %v2501
        %v2503 = vand.u32 %v298, 4294901760
        %2504 = vmatpush.msra.mxu0 %v2503
        %v2505 = vand.u32 %v297, 4294901760
        %2506 = vmatpush.msra.mxu0 %v2505
        %v2507 = vand.u32 %v296, 4294901760
        %2508 = vmatpush.msra.mxu0 %v2507
        %v2509 = vand.u32 %v295, 4294901760
        %2510 = vmatpush.msra.mxu0 %v2509
        %v2511 = vand.u32 %v294, 4294901760
        %2512 = vmatpush.msra.mxu0 %v2511
        %v2513 = vand.u32 %v293, 4294901760
        %2514 = vmatpush.msra.mxu0 %v2513
        %v2515 = vand.u32 %v292, 4294901760
        %2516 = vmatpush.msra.mxu0 %v2515
        %v2517 = vand.u32 %v291, 4294901760
        %2518 = vmatpush.msra.mxu0 %v2517
        %v2519 = vand.u32 %v290, 4294901760
        %2520 = vmatpush.msra.mxu0 %v2519
        %v2521 = vand.u32 %v289, 4294901760
        %2522 = vmatpush.msra.mxu0 %v2521
        %v2523 = vand.u32 %v288, 4294901760
        %2524 = vmatpush.msra.mxu0 %v2523
        %v2525 = vand.u32 %v2132, 4294901760
        %2526 = vmatmul.f32.gmra.mxu0 %v2525
        %v2527 = vpop.f32.mrf.mxu0
        %v2528 = vadd.f32 %v2483, %v2527
        %v2529 = vand.u32 %v2133, 4294901760
        %2530 = vmatmul.f32.gmra.mxu0 %v2529
        %v2531 = vpop.f32.mrf.mxu0
        %v2532 = vadd.f32 %v2487, %v2531
        %v2533 = vand.u32 %v2134, 4294901760
        %2534 = vmatmul.f32.gmra.mxu0 %v2533
        %v2535 = vpop.f32.mrf.mxu0
        %v2536 = vadd.f32 %v2491, %v2535
        %2537 = vdwg.mxu0
        %v2538 = vmul.f32 %v745, %v1184
        %v2539 = vmul.f32 %v749, %v1188
        %v2540 = vmul.f32 %v753, %v1192
        %v2541 = vmul.f32 %v2538, 0.012345679
        %v2542 = vmul.f32 %v2539, 0.012345679
        %v2543 = vmul.f32 %v2540, 0.012345679
        %v2544 = vsub.f32 %v2528, %v2541
        %v2545 = vsub.f32 %v2532, %v2542
        %v2546 = vsub.f32 %v2536, %v2543
        %v2547 = vmul.f32 %v2544, %v2544
        %v2548 = vmul.f32 %v2545, %v2545
        %v2549 = vmul.f32 %v2546, %v2546
        %v2550 = vmul.f32 %v1642, %v2093
        %v2551 = vmul.f32 %v1643, %v2094
        %v2552 = vmul.f32 %v1644, %v2095
        %v2553 = vadd.f32 %v2550, 1e-05
        %v2554 = vadd.f32 %v2551, 1e-05
        %v2555 = vadd.f32 %v2552, 1e-05
        %v2556 = vrcp.pop %v2553
        %v2557 = vrcp.pop %v2554
        %v2558 = vrcp.pop %v2555
        %v2559 = vmul.f32 %v2547, %v2556
        %v2560 = vmul.f32 %v2548, %v2557
        %v2561 = vmul.f32 %v2549, %v2558
        %v2562 = vld [vmem:[#allocation2] sm:$0xff]
        %v2563 = vmul.f32 %v2559, %v2562
        %v2564 = vld [vmem:[#allocation2 + $0x8] sm:$0xff]
        %v2565 = vmul.f32 %v2560, %v2564
        %v2566 = vld [vmem:[#allocation2 + $0x10] sm:$0xff]
        %v2567 = vmul.f32 %v2561, %v2566
        %v2568 = vadd.f32 %v2563, %v2565
        %v2569 = vadd.f32 %v2568, %v2567
        %2570 = vst [vmem:[%s287] sm:$0xff] %v2569
        %s2571 = sand.u32 %s122, 1
        %s2572 = scalar_lea.sflag [#allocation4], %s2571
        %s2573 = sand.u32 %s122, 1
        %s2574 = smul.addr %s2573, 8
        %s2575 = scalar_lea.vmem [#allocation9], %s2574
        // Predicated region
        $region53: #{tpu_custom_call.1} parent=35 // pred_check
          %p2576 = pneg %p132
        $region54: #{tpu_custom_call.1} parent=35 // pred_check_branch
          %2578 = sbr.rel (%p2576) target = $region56
        $region55: #{tpu_custom_call.1} parent=35 // pred_region
          %2580 = vsyncadd %s2572, 0
          %s2581 = smul.addr %s20, 8
          %s2582 = scalar_lea.hbm %s4, %s2581
          %s2584 = sshll.u32 %s2575, 4
          %s2585 = int_to_ptr.vmem [resolvable:$true] %s2584
          %s2586 = sshll.u32 %s2582, 4
          %s2587 = int_to_ptr.hbm [resolvable:$true] %s2586
          %2589 = dma.vmem_to_hbm [thread:$0]  %s2585, 128, %s2587, %s2572
        $region56: #{tpu_custom_call.1} parent=35 // pred_fallthru
          _
      $region36: #{tpu_custom_call.1} parent=5 // pred_fallthru
        _
      %p2590 = scmp.le.s32.totalorder 2, %s15
      // Predicated region
      $region57: #{tpu_custom_call.1} parent=5 // pred_check
        %p2591 = pneg %p2590
      $region58: #{tpu_custom_call.1} parent=5 // pred_check_branch
        %2593 = sbr.rel (%p2591) target = $region60
      $region59: #{tpu_custom_call.1} parent=5 // pred_region
        %s2594 = ssub.s32 %s15, 2
        // Predicated region
        $region61: #{tpu_custom_call.1} parent=59 // pred_check
          %p2595 = pneg %p138
        $region62: #{tpu_custom_call.1} parent=59 // pred_check_branch
          %2597 = sbr.rel (%p2595) target = $region64
        $region63: #{tpu_custom_call.1} parent=59 // pred_region
          %s2598 = sand.u32 %s123, 1
          %s2599 = scalar_lea.sflag [#allocation4], %s2598
          %s2600 = sand.u32 %s123, 1
          %s2601 = smul.addr %s2600, 8
          %s2602 = scalar_lea.vmem [#allocation9], %s2601
          %2604 = dma.done %s2599, 128
        $region64: #{tpu_custom_call.1} parent=59 // pred_fallthru
          _
      $region60: #{tpu_custom_call.1} parent=5 // pred_fallthru
        _
    $region6: #{tpu_custom_call.1} parent=1 // loop_footer
      %s19 = sadd.s32 1, %s15
    $region7: #{tpu_custom_call.1} parent=1 // loop_footer_branch
      %14 = sbr.rel target = $region3
    $region8: #{tpu_custom_call.1} parent=1 // loop_exit
      _
    %2605 = vsyncpa [#allocation3], 1
    %s2606 = scalar_lea.sflag [#allocation3], 1
    %2607 = vsyncpa %s2606, 1
    %2608 = vsyncpa [#allocation6], 1
    %2609 = vsyncpa [#allocation4], 1
    %s2610 = scalar_lea.sflag [#allocation4], 1
    %2611 = vsyncpa %s2610, 1

</llo_original>
